<compile_context>
chip_gen: v5e
topology: v5e:2x2
jax: 0.10.0
libtpu: 0.0.40
codegen_flags: <defaults>
</compile_context>

<pallas_src>
import functools

import jax
import jax.numpy as jnp
from jax.experimental import pallas as pl
from jax.experimental.pallas import tpu as pltpu


def _round_up(x, m):
    return ((x + m - 1) // m) * m


def _critic_kernel(xs_ref, w1_ref, b1_ref, w2_ref, wq_ref, bq_ref, q_ref):
    """One batch tile of the (branch-fused) Critic MLP.

    xs_ref : [TB, D]   streamed activations (f32 or bf16)
    w1_ref : [D,  H1]  fused first-layer weight (block-diag of self/others)
    b1_ref : [1,  H1]  fused first-layer bias (f32)
    w2_ref : [H1, H2]  fused second-layer weight (vstack of self/others)
    wq_ref : [1,  H2]  final projection row (f32)
    bq_ref : [1, 1]    final bias, SMEM scalar
    q_ref  : [TB, 1]
    """
    # Layer 1 (MXU, f32 accumulation); bias-add + ReLU in f32.
    x1 = jnp.dot(xs_ref[...], w1_ref[...], preferred_element_type=jnp.float32)
    x1 = jnp.maximum(x1 + b1_ref[...], 0.0)

    # Layer 2 (MXU). With the vstacked W2 this equals x2_self + x2_others.
    x2 = jnp.dot(x1, w2_ref[...], preferred_element_type=jnp.float32)
    x3 = jnp.maximum(x2, 0.0)

    # Final N=1 projection as VPU multiply + cross-lane reduce (frees the MXU slot).
    q = jnp.sum(x3 * wq_ref[...], axis=-1, keepdims=True) + bq_ref[0, 0]
    q_ref[...] = q.astype(q_ref.dtype)
    # TODO(synk): lane-dense [1, TB] output layout skipped (q is 1 value/row; win is negligible).


def _fuse_params(params, stage):
    """Exactly fuse the self/others branches into block-diag / stacked weights."""
    w1s = params["w1_self"].astype(jnp.float32)
    b1s = params["b1_self"].astype(jnp.float32)
    w2s = params["w2_self"].astype(jnp.float32)
    if stage > 1:
        w1o = params["w1_others"].astype(jnp.float32)
        b1o = params["b1_others"].astype(jnp.float32)
        w2o = params["w2_others"].astype(jnp.float32)
        ds, h1s = w1s.shape
        do, h1o = w1o.shape
        w1 = jnp.zeros((ds + do, h1s + h1o), jnp.float32)
        w1 = w1.at[:ds, :h1s].set(w1s).at[ds:, h1s:].set(w1o)
        b1 = jnp.concatenate([b1s, b1o], axis=-1)
        w2 = jnp.concatenate([w2s, w2o], axis=0)
    else:
        w1, b1, w2 = w1s, b1s, w2s
    wq = params["wq"].reshape(1, -1).astype(jnp.float32)   # [1, H2]
    bq = params["bq"].reshape(1, 1).astype(jnp.float32)    # [1, 1]
    return w1, b1, w2, wq, bq


@functools.partial(jax.jit, static_argnames=("stage", "tile_b", "use_bf16"))
def critic_forward(params, state_one, act_one, state_others, act_others,
                   *, stage=2, tile_b=512, use_bf16=False):
    """Critic forward pass; the whole MLP runs inside one Pallas kernel."""
    parts = [state_one, act_one]
    if stage > 1:
        parts += [state_others, act_others]
    xs = jnp.concatenate(parts, axis=-1).astype(jnp.float32)     # [B, D]
    w1, b1, w2, wq, bq = _fuse_params(params, stage)

    if use_bf16:
        # Halve HBM->VMEM bytes on the streamed data; accumulation stays f32.
        xs = xs.astype(jnp.bfloat16)
        w1 = w1.astype(jnp.bfloat16)

    B, D = xs.shape
    H1 = w1.shape[1]
    H2 = w2.shape[1]

    # Large batch tiles (per-grid-step overhead dominates otherwise), clamped to the
    # padded batch, aligned to sublane packing (8 rows f32 / 16 rows bf16).
    row_align = 16 if use_bf16 else 8
    tb = max(row_align, min(tile_b, _round_up(B, row_align)))
    tb = _round_up(tb, row_align)
    grid = (pl.cdiv(B, tb),)
    b_pad = grid[0] * tb
    if b_pad != B:
        xs = jnp.pad(xs, ((0, b_pad - B), (0, 0)))   # padded rows are discarded below

    q = pl.pallas_call(
        _critic_kernel,
        out_shape=jax.ShapeDtypeStruct((b_pad, 1), jnp.float32),
        grid_spec=pl.GridSpec(
            grid=grid,
            in_specs=[
                pl.BlockSpec((tb, D), lambda i: (i, 0)),        # streamed activations
                pl.BlockSpec((D, H1), lambda i: (0, 0)),        # fused W1 (resident)
                pl.BlockSpec((1, H1), lambda i: (0, 0)),        # fused b1
                pl.BlockSpec((H1, H2), lambda i: (0, 0)),       # fused W2
                pl.BlockSpec((1, H2), lambda i: (0, 0)),        # wq row
                pl.BlockSpec(memory_space=pltpu.MemorySpace.SMEM),  # bq scalar
            ],
            out_specs=pl.BlockSpec((tb, 1), lambda i: (i, 0)),
        ),
        compiler_params=pltpu.CompilerParams(
            dimension_semantics=("parallel",)),
    )(xs, w1, b1, w2, wq, bq)
    return q[:B]


def make_params(key, obs_shape, n_actions, n_agents,
                n_h1_self=64, n_h1_others=64, n_h2=64, stage=2):
    d_self = obs_shape + n_actions
    d_others = d_self * (n_agents - 1)
    ks = jax.random.split(key, 8)

    def linear_init(k, fan_in, fan_out):
        bound = 1.0 / jnp.sqrt(fan_in)
        kw, kb = jax.random.split(k)
        w = jax.random.uniform(kw, (fan_in, fan_out), jnp.float32, -bound, bound)
        b = jax.random.uniform(kb, (1, fan_out), jnp.float32, -bound, bound)
        return w, b

    w1s, b1s = linear_init(ks[0], d_self, n_h1_self)
    w2s = 0.01 * jax.random.normal(ks[1], (n_h1_self, n_h2), jnp.float32)
    wq, bq = linear_init(ks[2], n_h2, 1)
    params = {"w1_self": w1s, "b1_self": b1s, "w2_self": w2s, "wq": wq, "bq": bq}
    if stage > 1:
        w1o, b1o = linear_init(ks[3], d_others, n_h1_others)
        w2o = 0.01 * jax.random.normal(ks[4], (n_h1_others, n_h2), jnp.float32)
        params.update({"w1_others": w1o, "b1_others": b1o, "w2_others": w2o})
    return params


def reference_forward(params, state_one, act_one, state_others, act_others, stage=2):
    xs = jnp.concatenate([state_one, act_one], axis=-1)
    x1s = jax.nn.relu(xs @ params["w1_self"] + params["b1_self"])
    x2s = x1s @ params["w2_self"]
    if stage > 1:
        xo = jnp.concatenate([state_others, act_others], axis=-1)
        x1o = jax.nn.relu(xo @ params["w1_others"] + params["b1_others"])
        x2o = x1o @ params["w2_others"]
        x3 = jax.nn.relu(x2s + x2o)
    else:
        x3 = jax.nn.relu(x2s)
    return x3 @ params["wq"] + params["bq"]


if __name__ == "__main__":
    # args: obs_shape=16, n_actions=4, n_agents=3
    obs_shape, n_actions, n_agents = 16, 4, 3
    batch = 1000   # deliberately NOT a multiple of the batch tile -> exercises cdiv + padding

    key = jax.random.PRNGKey(0)
    kp1, kp2, k1, k2, k3, k4 = jax.random.split(key, 6)

    state_one = jax.random.normal(k1, (batch, obs_shape), jnp.float32)
    act_one = jax.random.normal(k2, (batch, n_actions), jnp.float32)
    state_others = jax.random.normal(k3, (batch, obs_shape * (n_agents - 1)), jnp.float32)
    act_others = jax.random.normal(k4, (batch, n_actions * (n_agents - 1)), jnp.float32)

    # ---- stage=2: both branches, fused block-diagonal weights ----
    params2 = make_params(kp1, obs_shape, n_actions, n_agents, stage=2)
    q2 = jax.block_until_ready(
        critic_forward(params2, state_one, act_one, state_others, act_others,
                       stage=2, tile_b=512))
    q2_ref = reference_forward(params2, state_one, act_one, state_others, act_others, stage=2)
    assert q2.shape == (batch, 1)
    assert jnp.allclose(q2, q2_ref, atol=1e-4, rtol=1e-4), \
        float(jnp.max(jnp.abs(q2 - q2_ref)))

    # ---- stage=1: self branch only ----
    params1 = make_params(kp2, obs_shape, n_actions, n_agents, stage=1)
    q1 = jax.block_until_ready(
        critic_forward(params1, state_one, act_one, state_others, act_others,
                       stage=1, tile_b=512))
    q1_ref = reference_forward(params1, state_one, act_one, state_others, act_others, stage=1)
    assert jnp.allclose(q1, q1_ref, atol=1e-4, rtol=1e-4), \
        float(jnp.max(jnp.abs(q1 - q1_ref)))

    # ---- bf16 activation streaming (v6e/v7x fast path), f32 accumulation ----
    q2_bf = jax.block_until_ready(
        critic_forward(params2, state_one, act_one, state_others, act_others,
                       stage=2, tile_b=512, use_bf16=True))
    assert jnp.allclose(q2_bf, q2_ref, atol=1e-2, rtol=1e-2), \
        float(jnp.max(jnp.abs(q2_bf - q2_ref)))

    print("KERNEL_OK")
</pallas_src>

<mosaic_0001>
module attributes {stable_mosaic.version = 11 : i64} {
  func.func @_critic_kernel(%arg0: i32, %arg1: memref<512x60xf32, #tpu.memory_space<vmem>>, %arg2: memref<60x128xf32, #tpu.memory_space<vmem>>, %arg3: memref<1x128xf32, #tpu.memory_space<vmem>>, %arg4: memref<128x64xf32, #tpu.memory_space<vmem>>, %arg5: memref<1x64xf32, #tpu.memory_space<vmem>>, %arg6: memref<1x1xf32, #tpu.memory_space<smem>>, %arg7: memref<512x1xf32, #tpu.memory_space<vmem>>) attributes {dimension_semantics = [#tpu.dimension_semantics<parallel>], iteration_bounds = array<i64: 2>, scalar_prefetch = 0 : i64, scratch_operands = 0 : i64, tpu.core_type = #tpu.core_type<tc>, window_params = [{transform_indices = @transform_0, window_bounds = array<i64: 512, 60>}, {pipeline_mode = #tpu.pipeline_mode<synchronous>, transform_indices = @transform_1, window_bounds = array<i64: 60, 128>}, {pipeline_mode = #tpu.pipeline_mode<synchronous>, transform_indices = @transform_2, window_bounds = array<i64: 1, 128>}, {pipeline_mode = #tpu.pipeline_mode<synchronous>, transform_indices = @transform_3, window_bounds = array<i64: 128, 64>}, {pipeline_mode = #tpu.pipeline_mode<synchronous>, transform_indices = @transform_4, window_bounds = array<i64: 1, 64>}, {transform_indices = @transform_5, window_bounds = array<i64: 1, 1>}, {transform_indices = @transform_6, window_bounds = array<i64: 512, 1>}]} {
    %c0 = arith.constant 0 : index
    %c0_0 = arith.constant 0 : index
    %0 = vector.load %arg1[%c0, %c0_0] : memref<512x60xf32, #tpu.memory_space<vmem>>, vector<512x60xf32>
    %c0_1 = arith.constant 0 : index
    %c0_2 = arith.constant 0 : index
    %1 = vector.load %arg2[%c0_1, %c0_2] : memref<60x128xf32, #tpu.memory_space<vmem>>, vector<60x128xf32>
    %cst = arith.constant dense<0.000000e+00> : vector<512x128xf32>
    %2 = tpu.matmul %0, %1, %cst {dimension_numbers = #tpu.dot_dimension_numbers<[1], [0], [0], [1], [0, 0, 1, 1], [], []>} : vector<512x60xf32>, vector<60x128xf32>, vector<512x128xf32> -> vector<512x128xf32>
    %c0_3 = arith.constant 0 : index
    %c0_4 = arith.constant 0 : index
    %3 = vector.load %arg3[%c0_3, %c0_4] : memref<1x128xf32, #tpu.memory_space<vmem>>, vector<1x128xf32>
    %4 = vector.broadcast %3 : vector<1x128xf32> to vector<512x128xf32>
    %5 = arith.addf %2, %4 : vector<512x128xf32>
    %cst_5 = arith.constant 0.000000e+00 : f32
    %6 = vector.broadcast %cst_5 : f32 to vector<512x128xf32>
    %7 = arith.maximumf %5, %6 : vector<512x128xf32>
    %c0_6 = arith.constant 0 : index
    %c0_7 = arith.constant 0 : index
    %8 = vector.load %arg4[%c0_6, %c0_7] : memref<128x64xf32, #tpu.memory_space<vmem>>, vector<128x64xf32>
    %cst_8 = arith.constant dense<0.000000e+00> : vector<512x64xf32>
    %9 = tpu.matmul %7, %8, %cst_8 {dimension_numbers = #tpu.dot_dimension_numbers<[1], [0], [0], [1], [0, 0, 1, 1], [], []>} : vector<512x128xf32>, vector<128x64xf32>, vector<512x64xf32> -> vector<512x64xf32>
    %cst_9 = arith.constant 0.000000e+00 : f32
    %10 = vector.broadcast %cst_9 : f32 to vector<512x64xf32>
    %11 = arith.maximumf %9, %10 : vector<512x64xf32>
    %c0_10 = arith.constant 0 : index
    %c0_11 = arith.constant 0 : index
    %12 = vector.load %arg5[%c0_10, %c0_11] : memref<1x64xf32, #tpu.memory_space<vmem>>, vector<1x64xf32>
    %13 = vector.broadcast %12 : vector<1x64xf32> to vector<512x64xf32>
    %14 = arith.mulf %11, %13 : vector<512x64xf32>
    %cst_12 = arith.constant dense<0.000000e+00> : vector<512xf32>
    %15 = vector.multi_reduction <add>, %14, %cst_12 [1] : vector<512x64xf32> to vector<512xf32>
    %16 = vector.shape_cast %15 : vector<512xf32> to vector<512x1xf32>
    %c0_13 = arith.constant 0 : index
    %c0_14 = arith.constant 0 : index
    %17 = memref.load %arg6[%c0_13, %c0_14] : memref<1x1xf32, #tpu.memory_space<smem>>
    %18 = vector.broadcast %17 : f32 to vector<512x1xf32>
    %19 = arith.addf %16, %18 : vector<512x1xf32>
    %c0_15 = arith.constant 0 : index
    %c0_16 = arith.constant 0 : index
    %20 = vector.load %arg7[%c0_15, %c0_16] : memref<512x1xf32, #tpu.memory_space<vmem>>, vector<512x1xf32>
    tpu.vector_store %arg7[%c0_15, %c0_16], %19 {strides = array<i32>} : memref<512x1xf32, #tpu.memory_space<vmem>>, vector<512x1xf32>,
    return
  }
  func.func @transform_0(%arg0: i32) -> (i32, i32) {
    %c0_i32 = arith.constant 0 : i32
    %c0_i32_0 = arith.constant 0 : i32
    return %arg0, %c0_i32 : i32, i32
  }
  func.func @transform_1(%arg0: i32) -> (i32, i32) {
    %c0_i32 = arith.constant 0 : i32
    %c0_i32_0 = arith.constant 0 : i32
    %c0_i32_1 = arith.constant 0 : i32
    return %c0_i32, %c0_i32_0 : i32, i32
  }
  func.func @transform_2(%arg0: i32) -> (i32, i32) {
    %c0_i32 = arith.constant 0 : i32
    %c0_i32_0 = arith.constant 0 : i32
    %c0_i32_1 = arith.constant 0 : i32
    return %c0_i32, %c0_i32_0 : i32, i32
  }
  func.func @transform_3(%arg0: i32) -> (i32, i32) {
    %c0_i32 = arith.constant 0 : i32
    %c0_i32_0 = arith.constant 0 : i32
    %c0_i32_1 = arith.constant 0 : i32
    return %c0_i32, %c0_i32_0 : i32, i32
  }
  func.func @transform_4(%arg0: i32) -> (i32, i32) {
    %c0_i32 = arith.constant 0 : i32
    %c0_i32_0 = arith.constant 0 : i32
    %c0_i32_1 = arith.constant 0 : i32
    return %c0_i32, %c0_i32_0 : i32, i32
  }
  func.func @transform_5(%arg0: i32) -> (i32, i32) {
    %c0_i32 = arith.constant 0 : i32
    %c0_i32_0 = arith.constant 0 : i32
    %c0_i32_1 = arith.constant 0 : i32
    return %c0_i32, %c0_i32_0 : i32, i32
  }
  func.func @transform_6(%arg0: i32) -> (i32, i32) {
    %c0_i32 = arith.constant 0 : i32
    %c0_i32_0 = arith.constant 0 : i32
    return %arg0, %c0_i32 : i32, i32
  }
}

</mosaic_0001>

<llo_original>
// kernel: critic_forward.1
$region0: #{critic_forward.1}
  #allocation0 [shape = 'u32[]', space=smem, size = 0x4, offset = 0x4, fixed_abs, tag = 'smem constant byte address 0x4 - core index']
  #allocation1 [shape = 'u32[72,128]{1,0:T(1,128)}', space=vmem, size = 0x9000, scoped, tag = 'internal scratch']
  #allocation2 [shape = 'f32[1,1]{1,0:T(1,128)S(6)}', space=smem, size = 0x200, scoped, tag = 'scoped memory for critic_forward.1']
  %s0 = inlined_call_operand.vmem [shape: f32[1024,60], index: 0, kind: input, shape index: {}]
  %s1 = inlined_call_operand.vmem [shape: f32[60,128], index: 1, kind: input, shape index: {}]
  %s2 = inlined_call_operand.vmem [shape: f32[1,128], index: 2, kind: input, shape index: {}]
  %s3 = inlined_call_operand.vmem [shape: f32[128,64], index: 3, kind: input, shape index: {}]
  %s4 = inlined_call_operand.vmem [shape: f32[1,64], index: 4, kind: input, shape index: {}]
  %s5 = inlined_call_operand.<no memory space> [shape: f32[1,1], index: 5, kind: input, shape index: {}]
  %s6 = inlined_call_operand.vmem [shape: f32[1024,1], index: 6, kind: output, shape index: {}]
  %s7 = sld [smem:[#allocation0]]
  $region57: #{critic_forward.1} parent=0
    _
  %s9 = ssub.s32 1, %s7
  %s10 = scalar_select 0, %s9, %s7
  %11 = sst [smem:[#allocation2]] %s5
  loop: start=0, step=1, limit=4
  $region2: #{critic_forward.1} parent=0 // loop_pre_header
    _
  $region3: #{critic_forward.1} parent=0 // loop_header
    %s13 = sphi 0, %s17
    %p14 = scmp.ge.s32.totalorder %s13, 4
    %s23 = sphi 0, %s25
    %s26 = sphi 0, %s23
    %s27 = sphi 0, %s26
    %s43 = sphi 0, %s27
    %s47 = sphi 0, %s47
    %s49 = sphi 0, %s47
    %s50 = sphi 0, %s49
    %s64 = sphi 0, %s50
    %s68 = sphi 0, %s68
    %s70 = sphi 0, %s68
    %s71 = sphi 0, %s70
    %s85 = sphi 0, %s71
    %s89 = sphi 0, %s89
    %s91 = sphi 0, %s89
    %s92 = sphi 0, %s91
    %s106 = sphi 0, %s92
    %s110 = sphi 0, %s110
    %s112 = sphi 0, %s110
    %s113 = sphi 0, %s112
    %s127 = sphi 0, %s113
    %s131 = sphi 0, %s131
    %s133 = sphi 0, %s131
    %s134 = sphi 0, %s133
    %s148 = sphi 0, %s134
    %s154 = sphi 0, %s156
    %s157 = sphi 0, %s154
    %s158 = sphi 0, %s157
    %s174 = sphi 0, %s158
  $region4: #{critic_forward.1} parent=0 // loop_header_branch
    %16 = sbr.rel (%p14) target = $region8
  $region5: #{critic_forward.1} parent=0 // loop_body
    %s18 = ssub.s32 %s13, 1
    %s19 = ssub.s32 %s13, 2
    %s20 = sadd.s32 %s13, 1
    %s21 = ssub.s32 %s13, %s20
    %p22 = scmp.eq.s32.totalorder %s21, 0
    %s24 = sadd.s32 %s23, 1
    %s25 = scalar_select %p22, %s23, %s24
    %p28 = pneg %p22
    %p29 = scmp.eq.s32.totalorder %s13, 1
    %p30 = por %p28, %p29
    %p31 = scmp.ne.s32.totalorder %s23, %s26
    %p32 = scmp.eq.s32.totalorder %s13, 0
    %p33 = por %p31, %p32
    %p34 = scmp.ne.s32.totalorder %s23, %s26
    %p35 = scmp.eq.s32.totalorder %s18, 1
    %p36 = por %p34, %p35
    %p37 = scmp.ne.s32.totalorder %s26, %s27
    %p38 = scmp.eq.s32.totalorder %s18, 0
    %p39 = por %p37, %p38
    %p40 = scmp.ne.s32.totalorder %s26, %s27
    %p41 = scmp.eq.s32.totalorder %s19, 1
    %p42 = por %p40, %p41
    %p44 = scmp.ne.s32.totalorder %s27, %s43
    %p45 = scmp.eq.s32.totalorder %s19, 0
    %p46 = por %p44, %p45
    %s48 = sadd.s32 %s47, 1
    %p51 = scmp.eq.s32.totalorder %s13, 1
    %p52 = scmp.ne.s32.totalorder %s47, %s49
    %p53 = scmp.eq.s32.totalorder %s13, 0
    %p54 = por %p52, %p53
    %p55 = scmp.ne.s32.totalorder %s47, %s49
    %p56 = scmp.eq.s32.totalorder %s18, 1
    %p57 = por %p55, %p56
    %p58 = scmp.ne.s32.totalorder %s49, %s50
    %p59 = scmp.eq.s32.totalorder %s18, 0
    %p60 = por %p58, %p59
    %p61 = scmp.ne.s32.totalorder %s49, %s50
    %p62 = scmp.eq.s32.totalorder %s19, 1
    %p63 = por %p61, %p62
    %p65 = scmp.ne.s32.totalorder %s50, %s64
    %p66 = scmp.eq.s32.totalorder %s19, 0
    %p67 = por %p65, %p66
    %s69 = sadd.s32 %s68, 1
    %p72 = scmp.eq.s32.totalorder %s13, 1
    %p73 = scmp.ne.s32.totalorder %s68, %s70
    %p74 = scmp.eq.s32.totalorder %s13, 0
    %p75 = por %p73, %p74
    %p76 = scmp.ne.s32.totalorder %s68, %s70
    %p77 = scmp.eq.s32.totalorder %s18, 1
    %p78 = por %p76, %p77
    %p79 = scmp.ne.s32.totalorder %s70, %s71
    %p80 = scmp.eq.s32.totalorder %s18, 0
    %p81 = por %p79, %p80
    %p82 = scmp.ne.s32.totalorder %s70, %s71
    %p83 = scmp.eq.s32.totalorder %s19, 1
    %p84 = por %p82, %p83
    %p86 = scmp.ne.s32.totalorder %s71, %s85
    %p87 = scmp.eq.s32.totalorder %s19, 0
    %p88 = por %p86, %p87
    %s90 = sadd.s32 %s89, 1
    %p93 = scmp.eq.s32.totalorder %s13, 1
    %p94 = scmp.ne.s32.totalorder %s89, %s91
    %p95 = scmp.eq.s32.totalorder %s13, 0
    %p96 = por %p94, %p95
    %p97 = scmp.ne.s32.totalorder %s89, %s91
    %p98 = scmp.eq.s32.totalorder %s18, 1
    %p99 = por %p97, %p98
    %p100 = scmp.ne.s32.totalorder %s91, %s92
    %p101 = scmp.eq.s32.totalorder %s18, 0
    %p102 = por %p100, %p101
    %p103 = scmp.ne.s32.totalorder %s91, %s92
    %p104 = scmp.eq.s32.totalorder %s19, 1
    %p105 = por %p103, %p104
    %p107 = scmp.ne.s32.totalorder %s92, %s106
    %p108 = scmp.eq.s32.totalorder %s19, 0
    %p109 = por %p107, %p108
    %s111 = sadd.s32 %s110, 1
    %p114 = scmp.eq.s32.totalorder %s13, 1
    %p115 = scmp.ne.s32.totalorder %s110, %s112
    %p116 = scmp.eq.s32.totalorder %s13, 0
    %p117 = por %p115, %p116
    %p118 = scmp.ne.s32.totalorder %s110, %s112
    %p119 = scmp.eq.s32.totalorder %s18, 1
    %p120 = por %p118, %p119
    %p121 = scmp.ne.s32.totalorder %s112, %s113
    %p122 = scmp.eq.s32.totalorder %s18, 0
    %p123 = por %p121, %p122
    %p124 = scmp.ne.s32.totalorder %s112, %s113
    %p125 = scmp.eq.s32.totalorder %s19, 1
    %p126 = por %p124, %p125
    %p128 = scmp.ne.s32.totalorder %s113, %s127
    %p129 = scmp.eq.s32.totalorder %s19, 0
    %p130 = por %p128, %p129
    %s132 = sadd.s32 %s131, 1
    %p135 = scmp.eq.s32.totalorder %s13, 1
    %p136 = scmp.ne.s32.totalorder %s131, %s133
    %p137 = scmp.eq.s32.totalorder %s13, 0
    %p138 = por %p136, %p137
    %p139 = scmp.ne.s32.totalorder %s131, %s133
    %p140 = scmp.eq.s32.totalorder %s18, 1
    %p141 = por %p139, %p140
    %p142 = scmp.ne.s32.totalorder %s133, %s134
    %p143 = scmp.eq.s32.totalorder %s18, 0
    %p144 = por %p142, %p143
    %p145 = scmp.ne.s32.totalorder %s133, %s134
    %p146 = scmp.eq.s32.totalorder %s19, 1
    %p147 = por %p145, %p146
    %p149 = scmp.ne.s32.totalorder %s134, %s148
    %p150 = scmp.eq.s32.totalorder %s19, 0
    %p151 = por %p149, %p150
    %s152 = ssub.s32 %s13, %s20
    %p153 = scmp.eq.s32.totalorder %s152, 0
    %s155 = sadd.s32 %s154, 1
    %s156 = scalar_select %p153, %s154, %s155
    %p159 = pneg %p153
    %p160 = scmp.eq.s32.totalorder %s13, 1
    %p161 = por %p159, %p160
    %p162 = scmp.ne.s32.totalorder %s154, %s157
    %p163 = scmp.eq.s32.totalorder %s13, 0
    %p164 = por %p162, %p163
    %p165 = scmp.ne.s32.totalorder %s154, %s157
    %p166 = scmp.eq.s32.totalorder %s18, 1
    %p167 = por %p165, %p166
    %p168 = scmp.ne.s32.totalorder %s157, %s158
    %p169 = scmp.eq.s32.totalorder %s18, 0
    %p170 = por %p168, %p169
    %p171 = scmp.ne.s32.totalorder %s157, %s158
    %p172 = scmp.eq.s32.totalorder %s19, 1
    %p173 = por %p171, %p172
    %p175 = scmp.ne.s32.totalorder %s158, %s174
    %p176 = scmp.eq.s32.totalorder %s19, 0
    %p177 = por %p175, %p176
    %p178 = scmp.le.s32.totalorder 1, %s13
    %p179 = scmp.lt.s32.totalorder %s13, 3
    %p180 = pnand %p178, %p179
    %p181 = pneg %p180
    // Predicated region
    $region9: #{critic_forward.1} parent=5 // pred_check
      _
    $region10: #{critic_forward.1} parent=5 // pred_check_branch
      %183 = sbr.rel (%p180) target = $region12
    $region11: #{critic_forward.1} parent=5 // pred_region
      %s184 = ssub.s32 %s13, 1
      // Predicated region
      $region13: #{critic_forward.1} parent=11 // pred_check
        %p185 = pneg %p60
      $region14: #{critic_forward.1} parent=11 // pred_check_branch
        %187 = sbr.rel (%p185) target = $region16
      $region15: #{critic_forward.1} parent=11 // pred_region
        _
      $region16: #{critic_forward.1} parent=11 // pred_fallthru
        _
      // Predicated region
      $region17: #{critic_forward.1} parent=11 // pred_check
        %p188 = pneg %p81
      $region18: #{critic_forward.1} parent=11 // pred_check_branch
        %190 = sbr.rel (%p188) target = $region20
      $region19: #{critic_forward.1} parent=11 // pred_region
        _
      $region20: #{critic_forward.1} parent=11 // pred_fallthru
        _
      // Predicated region
      $region21: #{critic_forward.1} parent=11 // pred_check
        %p191 = pneg %p102
      $region22: #{critic_forward.1} parent=11 // pred_check_branch
        %193 = sbr.rel (%p191) target = $region24
      $region23: #{critic_forward.1} parent=11 // pred_region
        _
      $region24: #{critic_forward.1} parent=11 // pred_fallthru
        _
      // Predicated region
      $region25: #{critic_forward.1} parent=11 // pred_check
        %p194 = pneg %p123
      $region26: #{critic_forward.1} parent=11 // pred_check_branch
        %196 = sbr.rel (%p194) target = $region28
      $region27: #{critic_forward.1} parent=11 // pred_region
        _
      $region28: #{critic_forward.1} parent=11 // pred_fallthru
        _
      // Predicated region
      $region29: #{critic_forward.1} parent=11 // pred_check
        %p197 = pneg %p144
      $region30: #{critic_forward.1} parent=11 // pred_check_branch
        %199 = sbr.rel (%p197) target = $region32
      $region31: #{critic_forward.1} parent=11 // pred_region
        _
      $region32: #{critic_forward.1} parent=11 // pred_fallthru
        _
    $region12: #{critic_forward.1} parent=5 // pred_fallthru
      _
    %p200 = scmp.lt.s32.totalorder %s13, 2
    // Predicated region
    $region33: #{critic_forward.1} parent=5 // pred_check
      %p201 = pneg %p200
    $region34: #{critic_forward.1} parent=5 // pred_check_branch
      %203 = sbr.rel (%p201) target = $region36
    $region35: #{critic_forward.1} parent=5 // pred_region
      // Predicated region
      $region37: #{critic_forward.1} parent=35 // pred_check
        %p204 = pneg %p33
      $region38: #{critic_forward.1} parent=35 // pred_check_branch
        %206 = sbr.rel (%p204) target = $region40
      $region39: #{critic_forward.1} parent=35 // pred_region
        %s207 = smul.u32 64, %s13
        %p208 = scmp.lt.s32.totalorder %s207, 127
        %s209 = scalar_select %p208, %s207, 127
        %s210 = smul.addr %s209, 8
        %s211 = scalar_lea.vmem %s0, %s210
        %s212 = smul.u32 64, %s13
      $region40: #{critic_forward.1} parent=35 // pred_fallthru
        _
    $region36: #{critic_forward.1} parent=5 // pred_fallthru
      _
    %p213 = scmp.le.s32.totalorder 1, %s13
    %p214 = scmp.lt.s32.totalorder %s13, 3
    %p215 = pnand %p213, %p214
    %p216 = pneg %p215
    // Predicated region
    $region41: #{critic_forward.1} parent=5 // pred_check
      _
    $region42: #{critic_forward.1} parent=5 // pred_check_branch
      %218 = sbr.rel (%p215) target = $region44
    $region43: #{critic_forward.1} parent=5 // pred_region
      %s219 = ssub.s32 %s13, 1
      %s220 = smul.u32 64, %s18
      %p221 = scmp.lt.s32.totalorder %s220, 127
      %s222 = scalar_select %p221, %s220, 127
      %s223 = smul.addr %s222, 8
      %s224 = scalar_lea.vmem %s0, %s223
      %p225 = pneg %p39
      %p226 = pneg %p36
      %p227 = pneg %p60
      %p228 = pneg %p57
      %p229 = pneg %p81
      %p230 = pneg %p78
      %p231 = pneg %p102
      %p232 = pneg %p99
      %p233 = pneg %p123
      %p234 = pneg %p120
      %p235 = pneg %p144
      %p236 = pneg %p141
      %p237 = pneg %p170
      %p238 = pneg %p167
      %s239 = smul.u32 64, %s18
      %p240 = scmp.lt.s32.totalorder %s239, 127
      %s241 = scalar_select %p240, %s239, 127
      %s242 = smul.addr %s241, 8
      %s243 = scalar_lea.vmem %s6, %s242
      %s244 = smul.u32 64, %s18
      %p245 = scmp.lt.s32.totalorder %s244, 127
      %s246 = scalar_select %p245, %s244, 127
      %s247 = smul.addr %s246, 8
      %s248 = scalar_lea.vmem %s0, %s247
      %s249 = smul.u32 64, %s18
      %s250 = smul.u32 64, %s18
      %p251 = scmp.lt.s32.totalorder %s250, 127
      %s252 = scalar_select %p251, %s250, 127
      %s253 = smul.addr %s252, 8
      %s254 = scalar_lea.vmem %s6, %s253
      %s255 = smul.u32 64, %s18
      %v256 = vld [vmem:[%s248] sm:$0xff]
      %v257 = vld [vmem:[%s248 + $0x8] sm:$0xff]
      %v258 = vld [vmem:[%s248 + $0x10] sm:$0xff]
      %v259 = vld [vmem:[%s248 + $0x18] sm:$0xff]
      %v260 = vld [vmem:[%s248 + $0x20] sm:$0xff]
      %v261 = vld [vmem:[%s248 + $0x28] sm:$0xff]
      %v262 = vld [vmem:[%s248 + $0x30] sm:$0xff]
      %v263 = vld [vmem:[%s248 + $0x38] sm:$0xff]
      %v264 = vld [vmem:[%s248 + $0x40] sm:$0xff]
      %v265 = vld [vmem:[%s248 + $0x48] sm:$0xff]
      %v266 = vld [vmem:[%s248 + $0x50] sm:$0xff]
      %v267 = vld [vmem:[%s248 + $0x58] sm:$0xff]
      %v268 = vld [vmem:[%s248 + $0x60] sm:$0xff]
      %v269 = vld [vmem:[%s248 + $0x68] sm:$0xff]
      %v270 = vld [vmem:[%s248 + $0x70] sm:$0xff]
      %v271 = vld [vmem:[%s248 + $0x78] sm:$0xff]
      %v272 = vld [vmem:[%s248 + $0x80] sm:$0xff]
      %v273 = vld [vmem:[%s248 + $0x88] sm:$0xff]
      %v274 = vld [vmem:[%s248 + $0x90] sm:$0xff]
      %v275 = vld [vmem:[%s248 + $0x98] sm:$0xff]
      %v276 = vld [vmem:[%s248 + $0xa0] sm:$0xff]
      %v277 = vld [vmem:[%s248 + $0xa8] sm:$0xff]
      %v278 = vld [vmem:[%s248 + $0xb0] sm:$0xff]
      %v279 = vld [vmem:[%s248 + $0xb8] sm:$0xff]
      %v280 = vld [vmem:[%s248 + $0xc0] sm:$0xff]
      %v281 = vld [vmem:[%s248 + $0xc8] sm:$0xff]
      %v282 = vld [vmem:[%s248 + $0xd0] sm:$0xff]
      %v283 = vld [vmem:[%s248 + $0xd8] sm:$0xff]
      %v284 = vld [vmem:[%s248 + $0xe0] sm:$0xff]
      %v285 = vld [vmem:[%s248 + $0xe8] sm:$0xff]
      %v286 = vld [vmem:[%s248 + $0xf0] sm:$0xff]
      %v287 = vld [vmem:[%s248 + $0xf8] sm:$0xff]
      %v288 = vld [vmem:[%s248 + $0x100] sm:$0xff]
      %v289 = vld [vmem:[%s248 + $0x108] sm:$0xff]
      %v290 = vld [vmem:[%s248 + $0x110] sm:$0xff]
      %v291 = vld [vmem:[%s248 + $0x118] sm:$0xff]
      %v292 = vld [vmem:[%s248 + $0x120] sm:$0xff]
      %v293 = vld [vmem:[%s248 + $0x128] sm:$0xff]
      %v294 = vld [vmem:[%s248 + $0x130] sm:$0xff]
      %v295 = vld [vmem:[%s248 + $0x138] sm:$0xff]
      %v296 = vld [vmem:[%s248 + $0x140] sm:$0xff]
      %v297 = vld [vmem:[%s248 + $0x148] sm:$0xff]
      %v298 = vld [vmem:[%s248 + $0x150] sm:$0xff]
      %v299 = vld [vmem:[%s248 + $0x158] sm:$0xff]
      %v300 = vld [vmem:[%s248 + $0x160] sm:$0xff]
      %v301 = vld [vmem:[%s248 + $0x168] sm:$0xff]
      %v302 = vld [vmem:[%s248 + $0x170] sm:$0xff]
      %v303 = vld [vmem:[%s248 + $0x178] sm:$0xff]
      %v304 = vld [vmem:[%s248 + $0x180] sm:$0xff]
      %v305 = vld [vmem:[%s248 + $0x188] sm:$0xff]
      %v306 = vld [vmem:[%s248 + $0x190] sm:$0xff]
      %v307 = vld [vmem:[%s248 + $0x198] sm:$0xff]
      %v308 = vld [vmem:[%s248 + $0x1a0] sm:$0xff]
      %v309 = vld [vmem:[%s248 + $0x1a8] sm:$0xff]
      %v310 = vld [vmem:[%s248 + $0x1b0] sm:$0xff]
      %v311 = vld [vmem:[%s248 + $0x1b8] sm:$0xff]
      %v312 = vld [vmem:[%s248 + $0x1c0] sm:$0xff]
      %v313 = vld [vmem:[%s248 + $0x1c8] sm:$0xff]
      %v314 = vld [vmem:[%s248 + $0x1d0] sm:$0xff]
      %v315 = vld [vmem:[%s248 + $0x1d8] sm:$0xff]
      %v316 = vld [vmem:[%s248 + $0x1e0] sm:$0xff]
      %v317 = vld [vmem:[%s248 + $0x1e8] sm:$0xff]
      %v318 = vld [vmem:[%s248 + $0x1f0] sm:$0xff]
      %v319 = vld [vmem:[%s248 + $0x1f8] sm:$0xff]
      %v320 = vld [vmem:[%s1] sm:$0xff]
      %v321 = vld [vmem:[%s1 + $0x8] sm:$0xff]
      %v322 = vld [vmem:[%s1 + $0x10] sm:$0xff]
      %v323 = vld [vmem:[%s1 + $0x18] sm:$0xff]
      %v324 = vld [vmem:[%s1 + $0x20] sm:$0xff]
      %v325 = vld [vmem:[%s1 + $0x28] sm:$0xff]
      %v326 = vld [vmem:[%s1 + $0x30] sm:$0xff]
      %v327 = vld [vmem:[%s1 + $0x38] sm:$0xf]
      %v328 = vld [vmem:[%s2] sm:$0x1]
      %v330 = vperm.slane %v328, 0
      %vm332 = vcmask 490496
      %v334 = vsel %vm332, %v256, 0
      %v337 = vsel %vm332, %v257, 0
      %v340 = vsel %vm332, %v258, 0
      %v343 = vsel %vm332, %v259, 0
      %v346 = vsel %vm332, %v260, 0
      %v349 = vsel %vm332, %v261, 0
      %v352 = vsel %vm332, %v262, 0
      %v355 = vsel %vm332, %v263, 0
      %v358 = vsel %vm332, %v264, 0
      %v361 = vsel %vm332, %v265, 0
      %v364 = vsel %vm332, %v266, 0
      %v367 = vsel %vm332, %v267, 0
      %v370 = vsel %vm332, %v268, 0
      %v373 = vsel %vm332, %v269, 0
      %v376 = vsel %vm332, %v270, 0
      %v379 = vsel %vm332, %v271, 0
      %v382 = vsel %vm332, %v272, 0
      %v385 = vsel %vm332, %v273, 0
      %v388 = vsel %vm332, %v274, 0
      %v391 = vsel %vm332, %v275, 0
      %v394 = vsel %vm332, %v276, 0
      %v397 = vsel %vm332, %v277, 0
      %v400 = vsel %vm332, %v278, 0
      %v403 = vsel %vm332, %v279, 0
      %v406 = vsel %vm332, %v280, 0
      %v409 = vsel %vm332, %v281, 0
      %v412 = vsel %vm332, %v282, 0
      %v415 = vsel %vm332, %v283, 0
      %v418 = vsel %vm332, %v284, 0
      %v421 = vsel %vm332, %v285, 0
      %v424 = vsel %vm332, %v286, 0
      %v427 = vsel %vm332, %v287, 0
      %v430 = vsel %vm332, %v288, 0
      %v433 = vsel %vm332, %v289, 0
      %v436 = vsel %vm332, %v290, 0
      %v439 = vsel %vm332, %v291, 0
      %v442 = vsel %vm332, %v292, 0
      %v445 = vsel %vm332, %v293, 0
      %v448 = vsel %vm332, %v294, 0
      %v451 = vsel %vm332, %v295, 0
      %v454 = vsel %vm332, %v296, 0
      %v457 = vsel %vm332, %v297, 0
      %v460 = vsel %vm332, %v298, 0
      %v463 = vsel %vm332, %v299, 0
      %v466 = vsel %vm332, %v300, 0
      %v469 = vsel %vm332, %v301, 0
      %v472 = vsel %vm332, %v302, 0
      %v475 = vsel %vm332, %v303, 0
      %v478 = vsel %vm332, %v304, 0
      %v481 = vsel %vm332, %v305, 0
      %v484 = vsel %vm332, %v306, 0
      %v487 = vsel %vm332, %v307, 0
      %v490 = vsel %vm332, %v308, 0
      %v493 = vsel %vm332, %v309, 0
      %v496 = vsel %vm332, %v310, 0
      %v499 = vsel %vm332, %v311, 0
      %v502 = vsel %vm332, %v312, 0
      %v505 = vsel %vm332, %v313, 0
      %v508 = vsel %vm332, %v314, 0
      %v511 = vsel %vm332, %v315, 0
      %v514 = vsel %vm332, %v316, 0
      %v517 = vsel %vm332, %v317, 0
      %v520 = vsel %vm332, %v318, 0
      %v523 = vsel %vm332, %v319, 0
      %vm525 = vcmask 1043456
      %v527 = vsel %vm525, %v327, 0
      %529 = vmatpush.msra.mxu0 0.0
      %530 = vmatpush.msra.mxu0 0.0
      %531 = vmatpush.msra.mxu0 0.0
      %532 = vmatpush.msra.mxu0 0.0
      %533 = vmatpush.msra.mxu0 0.0
      %534 = vmatpush.msra.mxu0 0.0
      %535 = vmatpush.msra.mxu0 0.0
      %536 = vmatpush.msra.mxu0 0.0
      %537 = vmatpush.msra.mxu0 %v527
      %538 = vmatpush.msra.mxu0 %v326
      %539 = vmatpush.msra.mxu0 %v325
      %540 = vmatpush.msra.mxu0 %v324
      %541 = vmatpush.msra.mxu0 %v323
      %542 = vmatpush.msra.mxu0 %v322
      %543 = vmatpush.msra.mxu0 %v321
      %544 = vmatpush.msra.mxu0 %v320
      %545 = vmatmul.f32.gmra.mxu0 %v334
      %v546 = vpop.f32.mrf.mxu0
      %v547 = vadd.f32 %v330, %v546
      %548 = vmatmul.f32.gmra.mxu0 %v337
      %v549 = vpop.f32.mrf.mxu0
      %v550 = vadd.f32 %v330, %v549
      %551 = vmatmul.f32.gmra.mxu0 %v340
      %v552 = vpop.f32.mrf.mxu0
      %v553 = vadd.f32 %v330, %v552
      %554 = vmatmul.f32.gmra.mxu0 %v343
      %v555 = vpop.f32.mrf.mxu0
      %v556 = vadd.f32 %v330, %v555
      %557 = vmatmul.f32.gmra.mxu0 %v346
      %v558 = vpop.f32.mrf.mxu0
      %v559 = vadd.f32 %v330, %v558
      %560 = vmatmul.f32.gmra.mxu0 %v349
      %v561 = vpop.f32.mrf.mxu0
      %v562 = vadd.f32 %v330, %v561
      %563 = vmatmul.f32.gmra.mxu0 %v352
      %v564 = vpop.f32.mrf.mxu0
      %v565 = vadd.f32 %v330, %v564
      %566 = vmatmul.f32.gmra.mxu0 %v355
      %v567 = vpop.f32.mrf.mxu0
      %v568 = vadd.f32 %v330, %v567
      %569 = vmatmul.f32.gmra.mxu0 %v358
      %v570 = vpop.f32.mrf.mxu0
      %v571 = vadd.f32 %v330, %v570
      %572 = vmatmul.f32.gmra.mxu0 %v361
      %v573 = vpop.f32.mrf.mxu0
      %v574 = vadd.f32 %v330, %v573
      %575 = vmatmul.f32.gmra.mxu0 %v364
      %v576 = vpop.f32.mrf.mxu0
      %v577 = vadd.f32 %v330, %v576
      %578 = vmatmul.f32.gmra.mxu0 %v367
      %v579 = vpop.f32.mrf.mxu0
      %v580 = vadd.f32 %v330, %v579
      %581 = vmatmul.f32.gmra.mxu0 %v370
      %v582 = vpop.f32.mrf.mxu0
      %v583 = vadd.f32 %v330, %v582
      %584 = vmatmul.f32.gmra.mxu0 %v373
      %v585 = vpop.f32.mrf.mxu0
      %v586 = vadd.f32 %v330, %v585
      %587 = vmatmul.f32.gmra.mxu0 %v376
      %v588 = vpop.f32.mrf.mxu0
      %v589 = vadd.f32 %v330, %v588
      %590 = vmatmul.f32.gmra.mxu0 %v379
      %v591 = vpop.f32.mrf.mxu0
      %v592 = vadd.f32 %v330, %v591
      %593 = vmatmul.f32.gmra.mxu0 %v382
      %v594 = vpop.f32.mrf.mxu0
      %v595 = vadd.f32 %v330, %v594
      %596 = vmatmul.f32.gmra.mxu0 %v385
      %v597 = vpop.f32.mrf.mxu0
      %v598 = vadd.f32 %v330, %v597
      %599 = vmatmul.f32.gmra.mxu0 %v388
      %v600 = vpop.f32.mrf.mxu0
      %v601 = vadd.f32 %v330, %v600
      %602 = vmatmul.f32.gmra.mxu0 %v391
      %v603 = vpop.f32.mrf.mxu0
      %v604 = vadd.f32 %v330, %v603
      %605 = vmatmul.f32.gmra.mxu0 %v394
      %v606 = vpop.f32.mrf.mxu0
      %v607 = vadd.f32 %v330, %v606
      %608 = vmatmul.f32.gmra.mxu0 %v397
      %v609 = vpop.f32.mrf.mxu0
      %v610 = vadd.f32 %v330, %v609
      %611 = vmatmul.f32.gmra.mxu0 %v400
      %v612 = vpop.f32.mrf.mxu0
      %v613 = vadd.f32 %v330, %v612
      %614 = vmatmul.f32.gmra.mxu0 %v403
      %v615 = vpop.f32.mrf.mxu0
      %v616 = vadd.f32 %v330, %v615
      %617 = vmatmul.f32.gmra.mxu0 %v406
      %v618 = vpop.f32.mrf.mxu0
      %v619 = vadd.f32 %v330, %v618
      %620 = vmatmul.f32.gmra.mxu0 %v409
      %v621 = vpop.f32.mrf.mxu0
      %v622 = vadd.f32 %v330, %v621
      %623 = vmatmul.f32.gmra.mxu0 %v412
      %v624 = vpop.f32.mrf.mxu0
      %v625 = vadd.f32 %v330, %v624
      %626 = vmatmul.f32.gmra.mxu0 %v415
      %v627 = vpop.f32.mrf.mxu0
      %v628 = vadd.f32 %v330, %v627
      %629 = vmatmul.f32.gmra.mxu0 %v418
      %v630 = vpop.f32.mrf.mxu0
      %v631 = vadd.f32 %v330, %v630
      %632 = vmatmul.f32.gmra.mxu0 %v421
      %v633 = vpop.f32.mrf.mxu0
      %v634 = vadd.f32 %v330, %v633
      %635 = vmatmul.f32.gmra.mxu0 %v424
      %v636 = vpop.f32.mrf.mxu0
      %v637 = vadd.f32 %v330, %v636
      %638 = vmatmul.f32.gmra.mxu0 %v427
      %v639 = vpop.f32.mrf.mxu0
      %v640 = vadd.f32 %v330, %v639
      %641 = vmatmul.f32.gmra.mxu0 %v430
      %v642 = vpop.f32.mrf.mxu0
      %v643 = vadd.f32 %v330, %v642
      %644 = vmatmul.f32.gmra.mxu0 %v433
      %v645 = vpop.f32.mrf.mxu0
      %v646 = vadd.f32 %v330, %v645
      %647 = vmatmul.f32.gmra.mxu0 %v436
      %v648 = vpop.f32.mrf.mxu0
      %v649 = vadd.f32 %v330, %v648
      %650 = vmatmul.f32.gmra.mxu0 %v439
      %v651 = vpop.f32.mrf.mxu0
      %v652 = vadd.f32 %v330, %v651
      %653 = vmatmul.f32.gmra.mxu0 %v442
      %v654 = vpop.f32.mrf.mxu0
      %v655 = vadd.f32 %v330, %v654
      %656 = vmatmul.f32.gmra.mxu0 %v445
      %v657 = vpop.f32.mrf.mxu0
      %v658 = vadd.f32 %v330, %v657
      %659 = vmatmul.f32.gmra.mxu0 %v448
      %v660 = vpop.f32.mrf.mxu0
      %v661 = vadd.f32 %v330, %v660
      %662 = vmatmul.f32.gmra.mxu0 %v451
      %v663 = vpop.f32.mrf.mxu0
      %v664 = vadd.f32 %v330, %v663
      %665 = vmatmul.f32.gmra.mxu0 %v454
      %v666 = vpop.f32.mrf.mxu0
      %v667 = vadd.f32 %v330, %v666
      %668 = vmatmul.f32.gmra.mxu0 %v457
      %v669 = vpop.f32.mrf.mxu0
      %v670 = vadd.f32 %v330, %v669
      %671 = vmatmul.f32.gmra.mxu0 %v460
      %v672 = vpop.f32.mrf.mxu0
      %v673 = vadd.f32 %v330, %v672
      %674 = vmatmul.f32.gmra.mxu0 %v463
      %v675 = vpop.f32.mrf.mxu0
      %v676 = vadd.f32 %v330, %v675
      %677 = vmatmul.f32.gmra.mxu0 %v466
      %v678 = vpop.f32.mrf.mxu0
      %v679 = vadd.f32 %v330, %v678
      %680 = vmatmul.f32.gmra.mxu0 %v469
      %v681 = vpop.f32.mrf.mxu0
      %v682 = vadd.f32 %v330, %v681
      %683 = vmatmul.f32.gmra.mxu0 %v472
      %v684 = vpop.f32.mrf.mxu0
      %v685 = vadd.f32 %v330, %v684
      %686 = vmatmul.f32.gmra.mxu0 %v475
      %v687 = vpop.f32.mrf.mxu0
      %v688 = vadd.f32 %v330, %v687
      %689 = vmatmul.f32.gmra.mxu0 %v478
      %v690 = vpop.f32.mrf.mxu0
      %v691 = vadd.f32 %v330, %v690
      %692 = vmatmul.f32.gmra.mxu0 %v481
      %v693 = vpop.f32.mrf.mxu0
      %v694 = vadd.f32 %v330, %v693
      %695 = vmatmul.f32.gmra.mxu0 %v484
      %v696 = vpop.f32.mrf.mxu0
      %v697 = vadd.f32 %v330, %v696
      %698 = vmatmul.f32.gmra.mxu0 %v487
      %v699 = vpop.f32.mrf.mxu0
      %v700 = vadd.f32 %v330, %v699
      %701 = vmatmul.f32.gmra.mxu0 %v490
      %v702 = vpop.f32.mrf.mxu0
      %v703 = vadd.f32 %v330, %v702
      %704 = vmatmul.f32.gmra.mxu0 %v493
      %v705 = vpop.f32.mrf.mxu0
      %v706 = vadd.f32 %v330, %v705
      %707 = vmatmul.f32.gmra.mxu0 %v496
      %v708 = vpop.f32.mrf.mxu0
      %v709 = vadd.f32 %v330, %v708
      %710 = vmatmul.f32.gmra.mxu0 %v499
      %v711 = vpop.f32.mrf.mxu0
      %v712 = vadd.f32 %v330, %v711
      %713 = vmatmul.f32.gmra.mxu0 %v502
      %v714 = vpop.f32.mrf.mxu0
      %v715 = vadd.f32 %v330, %v714
      %716 = vmatmul.f32.gmra.mxu0 %v505
      %v717 = vpop.f32.mrf.mxu0
      %v718 = vadd.f32 %v330, %v717
      %719 = vmatmul.f32.gmra.mxu0 %v508
      %v720 = vpop.f32.mrf.mxu0
      %v721 = vadd.f32 %v330, %v720
      %722 = vmatmul.f32.gmra.mxu0 %v511
      %v723 = vpop.f32.mrf.mxu0
      %v724 = vadd.f32 %v330, %v723
      %725 = vmatmul.f32.gmra.mxu0 %v514
      %v726 = vpop.f32.mrf.mxu0
      %v727 = vadd.f32 %v330, %v726
      %728 = vmatmul.f32.gmra.mxu0 %v517
      %v729 = vpop.f32.mrf.mxu0
      %v730 = vadd.f32 %v330, %v729
      %731 = vmatmul.f32.gmra.mxu0 %v520
      %v732 = vpop.f32.mrf.mxu0
      %v733 = vadd.f32 %v330, %v732
      %734 = vmatmul.f32.gmra.mxu0 %v523
      %v735 = vpop.f32.mrf.mxu0
      %v736 = vadd.f32 %v330, %v735
      %737 = vdwg.mxu0
      %v738 = vmax.f32 %v547, 0.0
      %v739 = vmax.f32 %v550, 0.0
      %v740 = vmax.f32 %v553, 0.0
      %v741 = vmax.f32 %v556, 0.0
      %v742 = vmax.f32 %v559, 0.0
      %v743 = vmax.f32 %v562, 0.0
      %v744 = vmax.f32 %v565, 0.0
      %v745 = vmax.f32 %v568, 0.0
      %v746 = vmax.f32 %v571, 0.0
      %v747 = vmax.f32 %v574, 0.0
      %v748 = vmax.f32 %v577, 0.0
      %v749 = vmax.f32 %v580, 0.0
      %v750 = vmax.f32 %v583, 0.0
      %v751 = vmax.f32 %v586, 0.0
      %v752 = vmax.f32 %v589, 0.0
      %v753 = vmax.f32 %v592, 0.0
      %v754 = vmax.f32 %v595, 0.0
      %v755 = vmax.f32 %v598, 0.0
      %v756 = vmax.f32 %v601, 0.0
      %v757 = vmax.f32 %v604, 0.0
      %v758 = vmax.f32 %v607, 0.0
      %v759 = vmax.f32 %v610, 0.0
      %v760 = vmax.f32 %v613, 0.0
      %v761 = vmax.f32 %v616, 0.0
      %v762 = vmax.f32 %v619, 0.0
      %v763 = vmax.f32 %v622, 0.0
      %v764 = vmax.f32 %v625, 0.0
      %v765 = vmax.f32 %v628, 0.0
      %v766 = vmax.f32 %v631, 0.0
      %v767 = vmax.f32 %v634, 0.0
      %v768 = vmax.f32 %v637, 0.0
      %v769 = vmax.f32 %v640, 0.0
      %v770 = vmax.f32 %v643, 0.0
      %v771 = vmax.f32 %v646, 0.0
      %v772 = vmax.f32 %v649, 0.0
      %v773 = vmax.f32 %v652, 0.0
      %v774 = vmax.f32 %v655, 0.0
      %v775 = vmax.f32 %v658, 0.0
      %v776 = vmax.f32 %v661, 0.0
      %v777 = vmax.f32 %v664, 0.0
      %v778 = vmax.f32 %v667, 0.0
      %v779 = vmax.f32 %v670, 0.0
      %v780 = vmax.f32 %v673, 0.0
      %v781 = vmax.f32 %v676, 0.0
      %v782 = vmax.f32 %v679, 0.0
      %v783 = vmax.f32 %v682, 0.0
      %v784 = vmax.f32 %v685, 0.0
      %v785 = vmax.f32 %v688, 0.0
      %v786 = vmax.f32 %v691, 0.0
      %v787 = vmax.f32 %v694, 0.0
      %v788 = vmax.f32 %v697, 0.0
      %v789 = vmax.f32 %v700, 0.0
      %v790 = vmax.f32 %v703, 0.0
      %v791 = vmax.f32 %v706, 0.0
      %v792 = vmax.f32 %v709, 0.0
      %v793 = vmax.f32 %v712, 0.0
      %v794 = vmax.f32 %v715, 0.0
      %v795 = vmax.f32 %v718, 0.0
      %v796 = vmax.f32 %v721, 0.0
      %v797 = vmax.f32 %v724, 0.0
      %v798 = vmax.f32 %v727, 0.0
      %v799 = vmax.f32 %v730, 0.0
      %v800 = vmax.f32 %v733, 0.0
      %v801 = vmax.f32 %v736, 0.0
      %v802 = vld [vmem:[%s3] sm:$0xff]
      %v803 = vld [vmem:[%s3 + $0x8] sm:$0xff]
      %v804 = vld [vmem:[%s3 + $0x10] sm:$0xff]
      %v805 = vld [vmem:[%s3 + $0x18] sm:$0xff]
      %v806 = vld [vmem:[%s3 + $0x20] sm:$0xff]
      %v807 = vld [vmem:[%s3 + $0x28] sm:$0xff]
      %v808 = vld [vmem:[%s3 + $0x30] sm:$0xff]
      %v809 = vld [vmem:[%s3 + $0x38] sm:$0xff]
      %v810 = vld [vmem:[%s3 + $0x40] sm:$0xff]
      %v811 = vld [vmem:[%s3 + $0x48] sm:$0xff]
      %v812 = vld [vmem:[%s3 + $0x50] sm:$0xff]
      %v813 = vld [vmem:[%s3 + $0x58] sm:$0xff]
      %v814 = vld [vmem:[%s3 + $0x60] sm:$0xff]
      %v815 = vld [vmem:[%s3 + $0x68] sm:$0xff]
      %v816 = vld [vmem:[%s3 + $0x70] sm:$0xff]
      %v817 = vld [vmem:[%s3 + $0x78] sm:$0xff]
      %818 = vmatpush.msra.mxu0 %v817
      %819 = vmatpush.msra.mxu0 %v816
      %820 = vmatpush.msra.mxu0 %v815
      %821 = vmatpush.msra.mxu0 %v814
      %822 = vmatpush.msra.mxu0 %v813
      %823 = vmatpush.msra.mxu0 %v812
      %824 = vmatpush.msra.mxu0 %v811
      %825 = vmatpush.msra.mxu0 %v810
      %826 = vmatpush.msra.mxu0 %v809
      %827 = vmatpush.msra.mxu0 %v808
      %828 = vmatpush.msra.mxu0 %v807
      %829 = vmatpush.msra.mxu0 %v806
      %830 = vmatpush.msra.mxu0 %v805
      %831 = vmatpush.msra.mxu0 %v804
      %832 = vmatpush.msra.mxu0 %v803
      %833 = vmatpush.msra.mxu0 %v802
      %834 = vmatmul.f32.gmra.mxu0 %v738
      %v835 = vpop.f32.mrf.mxu0
      %v836 = vadd.f32 0.0, %v835
      %837 = vmatmul.f32.gmra.mxu0 %v739
      %v838 = vpop.f32.mrf.mxu0
      %v839 = vadd.f32 0.0, %v838
      %840 = vmatmul.f32.gmra.mxu0 %v740
      %v841 = vpop.f32.mrf.mxu0
      %v842 = vadd.f32 0.0, %v841
      %843 = vmatmul.f32.gmra.mxu0 %v741
      %v844 = vpop.f32.mrf.mxu0
      %v845 = vadd.f32 0.0, %v844
      %846 = vmatmul.f32.gmra.mxu0 %v742
      %v847 = vpop.f32.mrf.mxu0
      %v848 = vadd.f32 0.0, %v847
      %849 = vmatmul.f32.gmra.mxu0 %v743
      %v850 = vpop.f32.mrf.mxu0
      %v851 = vadd.f32 0.0, %v850
      %852 = vmatmul.f32.gmra.mxu0 %v744
      %v853 = vpop.f32.mrf.mxu0
      %v854 = vadd.f32 0.0, %v853
      %855 = vmatmul.f32.gmra.mxu0 %v745
      %v856 = vpop.f32.mrf.mxu0
      %v857 = vadd.f32 0.0, %v856
      %858 = vmatmul.f32.gmra.mxu0 %v746
      %v859 = vpop.f32.mrf.mxu0
      %v860 = vadd.f32 0.0, %v859
      %861 = vmatmul.f32.gmra.mxu0 %v747
      %v862 = vpop.f32.mrf.mxu0
      %v863 = vadd.f32 0.0, %v862
      %864 = vmatmul.f32.gmra.mxu0 %v748
      %v865 = vpop.f32.mrf.mxu0
      %v866 = vadd.f32 0.0, %v865
      %867 = vmatmul.f32.gmra.mxu0 %v749
      %v868 = vpop.f32.mrf.mxu0
      %v869 = vadd.f32 0.0, %v868
      %870 = vmatmul.f32.gmra.mxu0 %v750
      %v871 = vpop.f32.mrf.mxu0
      %v872 = vadd.f32 0.0, %v871
      %873 = vmatmul.f32.gmra.mxu0 %v751
      %v874 = vpop.f32.mrf.mxu0
      %v875 = vadd.f32 0.0, %v874
      %876 = vmatmul.f32.gmra.mxu0 %v752
      %v877 = vpop.f32.mrf.mxu0
      %v878 = vadd.f32 0.0, %v877
      %879 = vmatmul.f32.gmra.mxu0 %v753
      %v880 = vpop.f32.mrf.mxu0
      %v881 = vadd.f32 0.0, %v880
      %882 = vmatmul.f32.gmra.mxu0 %v754
      %v883 = vpop.f32.mrf.mxu0
      %v884 = vadd.f32 0.0, %v883
      %885 = vmatmul.f32.gmra.mxu0 %v755
      %v886 = vpop.f32.mrf.mxu0
      %v887 = vadd.f32 0.0, %v886
      %888 = vmatmul.f32.gmra.mxu0 %v756
      %v889 = vpop.f32.mrf.mxu0
      %v890 = vadd.f32 0.0, %v889
      %891 = vmatmul.f32.gmra.mxu0 %v757
      %v892 = vpop.f32.mrf.mxu0
      %v893 = vadd.f32 0.0, %v892
      %894 = vmatmul.f32.gmra.mxu0 %v758
      %v895 = vpop.f32.mrf.mxu0
      %v896 = vadd.f32 0.0, %v895
      %897 = vmatmul.f32.gmra.mxu0 %v759
      %v898 = vpop.f32.mrf.mxu0
      %v899 = vadd.f32 0.0, %v898
      %900 = vmatmul.f32.gmra.mxu0 %v760
      %v901 = vpop.f32.mrf.mxu0
      %v902 = vadd.f32 0.0, %v901
      %903 = vmatmul.f32.gmra.mxu0 %v761
      %v904 = vpop.f32.mrf.mxu0
      %v905 = vadd.f32 0.0, %v904
      %906 = vmatmul.f32.gmra.mxu0 %v762
      %v907 = vpop.f32.mrf.mxu0
      %v908 = vadd.f32 0.0, %v907
      %909 = vmatmul.f32.gmra.mxu0 %v763
      %v910 = vpop.f32.mrf.mxu0
      %v911 = vadd.f32 0.0, %v910
      %912 = vmatmul.f32.gmra.mxu0 %v764
      %v913 = vpop.f32.mrf.mxu0
      %v914 = vadd.f32 0.0, %v913
      %915 = vmatmul.f32.gmra.mxu0 %v765
      %v916 = vpop.f32.mrf.mxu0
      %v917 = vadd.f32 0.0, %v916
      %918 = vmatmul.f32.gmra.mxu0 %v766
      %v919 = vpop.f32.mrf.mxu0
      %v920 = vadd.f32 0.0, %v919
      %921 = vmatmul.f32.gmra.mxu0 %v767
      %v922 = vpop.f32.mrf.mxu0
      %v923 = vadd.f32 0.0, %v922
      %924 = vmatmul.f32.gmra.mxu0 %v768
      %v925 = vpop.f32.mrf.mxu0
      %v926 = vadd.f32 0.0, %v925
      %927 = vmatmul.f32.gmra.mxu0 %v769
      %v928 = vpop.f32.mrf.mxu0
      %v929 = vadd.f32 0.0, %v928
      %930 = vmatmul.f32.gmra.mxu0 %v770
      %v931 = vpop.f32.mrf.mxu0
      %v932 = vadd.f32 0.0, %v931
      %933 = vmatmul.f32.gmra.mxu0 %v771
      %v934 = vpop.f32.mrf.mxu0
      %v935 = vadd.f32 0.0, %v934
      %936 = vmatmul.f32.gmra.mxu0 %v772
      %v937 = vpop.f32.mrf.mxu0
      %v938 = vadd.f32 0.0, %v937
      %939 = vmatmul.f32.gmra.mxu0 %v773
      %v940 = vpop.f32.mrf.mxu0
      %v941 = vadd.f32 0.0, %v940
      %942 = vmatmul.f32.gmra.mxu0 %v774
      %v943 = vpop.f32.mrf.mxu0
      %v944 = vadd.f32 0.0, %v943
      %945 = vmatmul.f32.gmra.mxu0 %v775
      %v946 = vpop.f32.mrf.mxu0
      %v947 = vadd.f32 0.0, %v946
      %948 = vmatmul.f32.gmra.mxu0 %v776
      %v949 = vpop.f32.mrf.mxu0
      %v950 = vadd.f32 0.0, %v949
      %951 = vmatmul.f32.gmra.mxu0 %v777
      %v952 = vpop.f32.mrf.mxu0
      %v953 = vadd.f32 0.0, %v952
      %954 = vmatmul.f32.gmra.mxu0 %v778
      %v955 = vpop.f32.mrf.mxu0
      %v956 = vadd.f32 0.0, %v955
      %957 = vmatmul.f32.gmra.mxu0 %v779
      %v958 = vpop.f32.mrf.mxu0
      %v959 = vadd.f32 0.0, %v958
      %960 = vmatmul.f32.gmra.mxu0 %v780
      %v961 = vpop.f32.mrf.mxu0
      %v962 = vadd.f32 0.0, %v961
      %963 = vmatmul.f32.gmra.mxu0 %v781
      %v964 = vpop.f32.mrf.mxu0
      %v965 = vadd.f32 0.0, %v964
      %966 = vmatmul.f32.gmra.mxu0 %v782
      %v967 = vpop.f32.mrf.mxu0
      %v968 = vadd.f32 0.0, %v967
      %969 = vmatmul.f32.gmra.mxu0 %v783
      %v970 = vpop.f32.mrf.mxu0
      %v971 = vadd.f32 0.0, %v970
      %972 = vmatmul.f32.gmra.mxu0 %v784
      %v973 = vpop.f32.mrf.mxu0
      %v974 = vadd.f32 0.0, %v973
      %975 = vmatmul.f32.gmra.mxu0 %v785
      %v976 = vpop.f32.mrf.mxu0
      %v977 = vadd.f32 0.0, %v976
      %978 = vmatmul.f32.gmra.mxu0 %v786
      %v979 = vpop.f32.mrf.mxu0
      %v980 = vadd.f32 0.0, %v979
      %981 = vmatmul.f32.gmra.mxu0 %v787
      %v982 = vpop.f32.mrf.mxu0
      %v983 = vadd.f32 0.0, %v982
      %984 = vmatmul.f32.gmra.mxu0 %v788
      %v985 = vpop.f32.mrf.mxu0
      %v986 = vadd.f32 0.0, %v985
      %987 = vmatmul.f32.gmra.mxu0 %v789
      %v988 = vpop.f32.mrf.mxu0
      %v989 = vadd.f32 0.0, %v988
      %990 = vmatmul.f32.gmra.mxu0 %v790
      %v991 = vpop.f32.mrf.mxu0
      %v992 = vadd.f32 0.0, %v991
      %993 = vmatmul.f32.gmra.mxu0 %v791
      %v994 = vpop.f32.mrf.mxu0
      %v995 = vadd.f32 0.0, %v994
      %996 = vmatmul.f32.gmra.mxu0 %v792
      %v997 = vpop.f32.mrf.mxu0
      %v998 = vadd.f32 0.0, %v997
      %999 = vmatmul.f32.gmra.mxu0 %v793
      %v1000 = vpop.f32.mrf.mxu0
      %v1001 = vadd.f32 0.0, %v1000
      %1002 = vmatmul.f32.gmra.mxu0 %v794
      %v1003 = vpop.f32.mrf.mxu0
      %v1004 = vadd.f32 0.0, %v1003
      %1005 = vmatmul.f32.gmra.mxu0 %v795
      %v1006 = vpop.f32.mrf.mxu0
      %v1007 = vadd.f32 0.0, %v1006
      %1008 = vmatmul.f32.gmra.mxu0 %v796
      %v1009 = vpop.f32.mrf.mxu0
      %v1010 = vadd.f32 0.0, %v1009
      %1011 = vmatmul.f32.gmra.mxu0 %v797
      %v1012 = vpop.f32.mrf.mxu0
      %v1013 = vadd.f32 0.0, %v1012
      %1014 = vmatmul.f32.gmra.mxu0 %v798
      %v1015 = vpop.f32.mrf.mxu0
      %v1016 = vadd.f32 0.0, %v1015
      %1017 = vmatmul.f32.gmra.mxu0 %v799
      %v1018 = vpop.f32.mrf.mxu0
      %v1019 = vadd.f32 0.0, %v1018
      %1020 = vmatmul.f32.gmra.mxu0 %v800
      %v1021 = vpop.f32.mrf.mxu0
      %v1022 = vadd.f32 0.0, %v1021
      %1023 = vmatmul.f32.gmra.mxu0 %v801
      %v1024 = vpop.f32.mrf.mxu0
      %v1025 = vadd.f32 0.0, %v1024
      %1026 = vdwg.mxu0
      %v1027 = vmax.f32 %v836, 0.0
      %v1028 = vmax.f32 %v839, 0.0
      %v1029 = vmax.f32 %v842, 0.0
      %v1030 = vmax.f32 %v845, 0.0
      %v1031 = vmax.f32 %v848, 0.0
      %v1032 = vmax.f32 %v851, 0.0
      %v1033 = vmax.f32 %v854, 0.0
      %v1034 = vmax.f32 %v857, 0.0
      %v1035 = vmax.f32 %v860, 0.0
      %v1036 = vmax.f32 %v863, 0.0
      %v1037 = vmax.f32 %v866, 0.0
      %v1038 = vmax.f32 %v869, 0.0
      %v1039 = vmax.f32 %v872, 0.0
      %v1040 = vmax.f32 %v875, 0.0
      %v1041 = vmax.f32 %v878, 0.0
      %v1042 = vmax.f32 %v881, 0.0
      %v1043 = vmax.f32 %v884, 0.0
      %v1044 = vmax.f32 %v887, 0.0
      %v1045 = vmax.f32 %v890, 0.0
      %v1046 = vmax.f32 %v893, 0.0
      %v1047 = vmax.f32 %v896, 0.0
      %v1048 = vmax.f32 %v899, 0.0
      %v1049 = vmax.f32 %v902, 0.0
      %v1050 = vmax.f32 %v905, 0.0
      %v1051 = vmax.f32 %v908, 0.0
      %v1052 = vmax.f32 %v911, 0.0
      %v1053 = vmax.f32 %v914, 0.0
      %v1054 = vmax.f32 %v917, 0.0
      %v1055 = vmax.f32 %v920, 0.0
      %v1056 = vmax.f32 %v923, 0.0
      %v1057 = vmax.f32 %v926, 0.0
      %v1058 = vmax.f32 %v929, 0.0
      %v1059 = vmax.f32 %v932, 0.0
      %v1060 = vmax.f32 %v935, 0.0
      %v1061 = vmax.f32 %v938, 0.0
      %v1062 = vmax.f32 %v941, 0.0
      %v1063 = vmax.f32 %v944, 0.0
      %v1064 = vmax.f32 %v947, 0.0
      %v1065 = vmax.f32 %v950, 0.0
      %v1066 = vmax.f32 %v953, 0.0
      %v1067 = vmax.f32 %v956, 0.0
      %v1068 = vmax.f32 %v959, 0.0
      %v1069 = vmax.f32 %v962, 0.0
      %v1070 = vmax.f32 %v965, 0.0
      %v1071 = vmax.f32 %v968, 0.0
      %v1072 = vmax.f32 %v971, 0.0
      %v1073 = vmax.f32 %v974, 0.0
      %v1074 = vmax.f32 %v977, 0.0
      %v1075 = vmax.f32 %v980, 0.0
      %v1076 = vmax.f32 %v983, 0.0
      %v1077 = vmax.f32 %v986, 0.0
      %v1078 = vmax.f32 %v989, 0.0
      %v1079 = vmax.f32 %v992, 0.0
      %v1080 = vmax.f32 %v995, 0.0
      %v1081 = vmax.f32 %v998, 0.0
      %v1082 = vmax.f32 %v1001, 0.0
      %v1083 = vmax.f32 %v1004, 0.0
      %v1084 = vmax.f32 %v1007, 0.0
      %v1085 = vmax.f32 %v1010, 0.0
      %v1086 = vmax.f32 %v1013, 0.0
      %v1087 = vmax.f32 %v1016, 0.0
      %v1088 = vmax.f32 %v1019, 0.0
      %v1089 = vmax.f32 %v1022, 0.0
      %v1090 = vmax.f32 %v1025, 0.0
      %v1091 = vld [vmem:[%s4] sm:$0x1]
      %v1093 = vperm.slane %v1091, 0
      %v1095 = vmul.f32 %v1027, %v1093
      %v1096 = vmul.f32 %v1028, %v1093
      %v1097 = vmul.f32 %v1029, %v1093
      %v1098 = vmul.f32 %v1030, %v1093
      %v1099 = vmul.f32 %v1031, %v1093
      %v1100 = vmul.f32 %v1032, %v1093
      %v1101 = vmul.f32 %v1033, %v1093
      %v1102 = vmul.f32 %v1034, %v1093
      %v1103 = vmul.f32 %v1035, %v1093
      %v1104 = vmul.f32 %v1036, %v1093
      %v1105 = vmul.f32 %v1037, %v1093
      %v1106 = vmul.f32 %v1038, %v1093
      %v1107 = vmul.f32 %v1039, %v1093
      %v1108 = vmul.f32 %v1040, %v1093
      %v1109 = vmul.f32 %v1041, %v1093
      %v1110 = vmul.f32 %v1042, %v1093
      %v1111 = vmul.f32 %v1043, %v1093
      %v1112 = vmul.f32 %v1044, %v1093
      %v1113 = vmul.f32 %v1045, %v1093
      %v1114 = vmul.f32 %v1046, %v1093
      %v1115 = vmul.f32 %v1047, %v1093
      %v1116 = vmul.f32 %v1048, %v1093
      %v1117 = vmul.f32 %v1049, %v1093
      %v1118 = vmul.f32 %v1050, %v1093
      %v1119 = vmul.f32 %v1051, %v1093
      %v1120 = vmul.f32 %v1052, %v1093
      %v1121 = vmul.f32 %v1053, %v1093
      %v1122 = vmul.f32 %v1054, %v1093
      %v1123 = vmul.f32 %v1055, %v1093
      %v1124 = vmul.f32 %v1056, %v1093
      %v1125 = vmul.f32 %v1057, %v1093
      %v1126 = vmul.f32 %v1058, %v1093
      %v1127 = vmul.f32 %v1059, %v1093
      %v1128 = vmul.f32 %v1060, %v1093
      %v1129 = vmul.f32 %v1061, %v1093
      %v1130 = vmul.f32 %v1062, %v1093
      %v1131 = vmul.f32 %v1063, %v1093
      %v1132 = vmul.f32 %v1064, %v1093
      %v1133 = vmul.f32 %v1065, %v1093
      %v1134 = vmul.f32 %v1066, %v1093
      %v1135 = vmul.f32 %v1067, %v1093
      %v1136 = vmul.f32 %v1068, %v1093
      %v1137 = vmul.f32 %v1069, %v1093
      %v1138 = vmul.f32 %v1070, %v1093
      %v1139 = vmul.f32 %v1071, %v1093
      %v1140 = vmul.f32 %v1072, %v1093
      %v1141 = vmul.f32 %v1073, %v1093
      %v1142 = vmul.f32 %v1074, %v1093
      %v1143 = vmul.f32 %v1075, %v1093
      %v1144 = vmul.f32 %v1076, %v1093
      %v1145 = vmul.f32 %v1077, %v1093
      %v1146 = vmul.f32 %v1078, %v1093
      %v1147 = vmul.f32 %v1079, %v1093
      %v1148 = vmul.f32 %v1080, %v1093
      %v1149 = vmul.f32 %v1081, %v1093
      %v1150 = vmul.f32 %v1082, %v1093
      %v1151 = vmul.f32 %v1083, %v1093
      %v1152 = vmul.f32 %v1084, %v1093
      %v1153 = vmul.f32 %v1085, %v1093
      %v1154 = vmul.f32 %v1086, %v1093
      %v1155 = vmul.f32 %v1087, %v1093
      %v1156 = vmul.f32 %v1088, %v1093
      %v1157 = vmul.f32 %v1089, %v1093
      %v1158 = vmul.f32 %v1090, %v1093
      %vm1159 = vcmask 523264
      %v1160 = vsel %vm1159, %v1095, 0.0
      %1161 = vadd.xlane.f32.xlu0 %v1160
      %v1162 = vpop.xlane.xlu0 %1161
      %v1163 = vsel %vm1159, %v1096, 0.0
      %1164 = vadd.xlane.f32.xlu0 %v1163
      %v1165 = vpop.xlane.xlu0 %1164
      %v1166 = vsel %vm1159, %v1097, 0.0
      %1167 = vadd.xlane.f32.xlu0 %v1166
      %v1168 = vpop.xlane.xlu0 %1167
      %v1169 = vsel %vm1159, %v1098, 0.0
      %1170 = vadd.xlane.f32.xlu0 %v1169
      %v1171 = vpop.xlane.xlu0 %1170
      %v1172 = vsel %vm1159, %v1099, 0.0
      %1173 = vadd.xlane.f32.xlu0 %v1172
      %v1174 = vpop.xlane.xlu0 %1173
      %v1175 = vsel %vm1159, %v1100, 0.0
      %1176 = vadd.xlane.f32.xlu0 %v1175
      %v1177 = vpop.xlane.xlu0 %1176
      %v1178 = vsel %vm1159, %v1101, 0.0
      %1179 = vadd.xlane.f32.xlu0 %v1178
      %v1180 = vpop.xlane.xlu0 %1179
      %v1181 = vsel %vm1159, %v1102, 0.0
      %1182 = vadd.xlane.f32.xlu0 %v1181
      %v1183 = vpop.xlane.xlu0 %1182
      %v1184 = vsel %vm1159, %v1103, 0.0
      %1185 = vadd.xlane.f32.xlu0 %v1184
      %v1186 = vpop.xlane.xlu0 %1185
      %v1187 = vsel %vm1159, %v1104, 0.0
      %1188 = vadd.xlane.f32.xlu0 %v1187
      %v1189 = vpop.xlane.xlu0 %1188
      %v1190 = vsel %vm1159, %v1105, 0.0
      %1191 = vadd.xlane.f32.xlu0 %v1190
      %v1192 = vpop.xlane.xlu0 %1191
      %v1193 = vsel %vm1159, %v1106, 0.0
      %1194 = vadd.xlane.f32.xlu0 %v1193
      %v1195 = vpop.xlane.xlu0 %1194
      %v1196 = vsel %vm1159, %v1107, 0.0
      %1197 = vadd.xlane.f32.xlu0 %v1196
      %v1198 = vpop.xlane.xlu0 %1197
      %v1199 = vsel %vm1159, %v1108, 0.0
      %1200 = vadd.xlane.f32.xlu0 %v1199
      %v1201 = vpop.xlane.xlu0 %1200
      %v1202 = vsel %vm1159, %v1109, 0.0
      %1203 = vadd.xlane.f32.xlu0 %v1202
      %v1204 = vpop.xlane.xlu0 %1203
      %v1205 = vsel %vm1159, %v1110, 0.0
      %1206 = vadd.xlane.f32.xlu0 %v1205
      %v1207 = vpop.xlane.xlu0 %1206
      %v1208 = vsel %vm1159, %v1111, 0.0
      %1209 = vadd.xlane.f32.xlu0 %v1208
      %v1210 = vpop.xlane.xlu0 %1209
      %v1211 = vsel %vm1159, %v1112, 0.0
      %1212 = vadd.xlane.f32.xlu0 %v1211
      %v1213 = vpop.xlane.xlu0 %1212
      %v1214 = vsel %vm1159, %v1113, 0.0
      %1215 = vadd.xlane.f32.xlu0 %v1214
      %v1216 = vpop.xlane.xlu0 %1215
      %v1217 = vsel %vm1159, %v1114, 0.0
      %1218 = vadd.xlane.f32.xlu0 %v1217
      %v1219 = vpop.xlane.xlu0 %1218
      %v1220 = vsel %vm1159, %v1115, 0.0
      %1221 = vadd.xlane.f32.xlu0 %v1220
      %v1222 = vpop.xlane.xlu0 %1221
      %v1223 = vsel %vm1159, %v1116, 0.0
      %1224 = vadd.xlane.f32.xlu0 %v1223
      %v1225 = vpop.xlane.xlu0 %1224
      %v1226 = vsel %vm1159, %v1117, 0.0
      %1227 = vadd.xlane.f32.xlu0 %v1226
      %v1228 = vpop.xlane.xlu0 %1227
      %v1229 = vsel %vm1159, %v1118, 0.0
      %1230 = vadd.xlane.f32.xlu0 %v1229
      %v1231 = vpop.xlane.xlu0 %1230
      %v1232 = vsel %vm1159, %v1119, 0.0
      %1233 = vadd.xlane.f32.xlu0 %v1232
      %v1234 = vpop.xlane.xlu0 %1233
      %v1235 = vsel %vm1159, %v1120, 0.0
      %1236 = vadd.xlane.f32.xlu0 %v1235
      %v1237 = vpop.xlane.xlu0 %1236
      %v1238 = vsel %vm1159, %v1121, 0.0
      %1239 = vadd.xlane.f32.xlu0 %v1238
      %v1240 = vpop.xlane.xlu0 %1239
      %v1241 = vsel %vm1159, %v1122, 0.0
      %1242 = vadd.xlane.f32.xlu0 %v1241
      %v1243 = vpop.xlane.xlu0 %1242
      %v1244 = vsel %vm1159, %v1123, 0.0
      %1245 = vadd.xlane.f32.xlu0 %v1244
      %v1246 = vpop.xlane.xlu0 %1245
      %v1247 = vsel %vm1159, %v1124, 0.0
      %1248 = vadd.xlane.f32.xlu0 %v1247
      %v1249 = vpop.xlane.xlu0 %1248
      %v1250 = vsel %vm1159, %v1125, 0.0
      %1251 = vadd.xlane.f32.xlu0 %v1250
      %v1252 = vpop.xlane.xlu0 %1251
      %v1253 = vsel %vm1159, %v1126, 0.0
      %1254 = vadd.xlane.f32.xlu0 %v1253
      %v1255 = vpop.xlane.xlu0 %1254
      %v1256 = vsel %vm1159, %v1127, 0.0
      %1257 = vadd.xlane.f32.xlu0 %v1256
      %v1258 = vpop.xlane.xlu0 %1257
      %v1259 = vsel %vm1159, %v1128, 0.0
      %1260 = vadd.xlane.f32.xlu0 %v1259
      %v1261 = vpop.xlane.xlu0 %1260
      %v1262 = vsel %vm1159, %v1129, 0.0
      %1263 = vadd.xlane.f32.xlu0 %v1262
      %v1264 = vpop.xlane.xlu0 %1263
      %v1265 = vsel %vm1159, %v1130, 0.0
      %1266 = vadd.xlane.f32.xlu0 %v1265
      %v1267 = vpop.xlane.xlu0 %1266
      %v1268 = vsel %vm1159, %v1131, 0.0
      %1269 = vadd.xlane.f32.xlu0 %v1268
      %v1270 = vpop.xlane.xlu0 %1269
      %v1271 = vsel %vm1159, %v1132, 0.0
      %1272 = vadd.xlane.f32.xlu0 %v1271
      %v1273 = vpop.xlane.xlu0 %1272
      %v1274 = vsel %vm1159, %v1133, 0.0
      %1275 = vadd.xlane.f32.xlu0 %v1274
      %v1276 = vpop.xlane.xlu0 %1275
      %v1277 = vsel %vm1159, %v1134, 0.0
      %1278 = vadd.xlane.f32.xlu0 %v1277
      %v1279 = vpop.xlane.xlu0 %1278
      %v1280 = vsel %vm1159, %v1135, 0.0
      %1281 = vadd.xlane.f32.xlu0 %v1280
      %v1282 = vpop.xlane.xlu0 %1281
      %v1283 = vsel %vm1159, %v1136, 0.0
      %1284 = vadd.xlane.f32.xlu0 %v1283
      %v1285 = vpop.xlane.xlu0 %1284
      %v1286 = vsel %vm1159, %v1137, 0.0
      %1287 = vadd.xlane.f32.xlu0 %v1286
      %v1288 = vpop.xlane.xlu0 %1287
      %v1289 = vsel %vm1159, %v1138, 0.0
      %1290 = vadd.xlane.f32.xlu0 %v1289
      %v1291 = vpop.xlane.xlu0 %1290
      %v1292 = vsel %vm1159, %v1139, 0.0
      %1293 = vadd.xlane.f32.xlu0 %v1292
      %v1294 = vpop.xlane.xlu0 %1293
      %v1295 = vsel %vm1159, %v1140, 0.0
      %1296 = vadd.xlane.f32.xlu0 %v1295
      %v1297 = vpop.xlane.xlu0 %1296
      %v1298 = vsel %vm1159, %v1141, 0.0
      %1299 = vadd.xlane.f32.xlu0 %v1298
      %v1300 = vpop.xlane.xlu0 %1299
      %v1301 = vsel %vm1159, %v1142, 0.0
      %1302 = vadd.xlane.f32.xlu0 %v1301
      %v1303 = vpop.xlane.xlu0 %1302
      %v1304 = vsel %vm1159, %v1143, 0.0
      %1305 = vadd.xlane.f32.xlu0 %v1304
      %v1306 = vpop.xlane.xlu0 %1305
      %v1307 = vsel %vm1159, %v1144, 0.0
      %1308 = vadd.xlane.f32.xlu0 %v1307
      %v1309 = vpop.xlane.xlu0 %1308
      %v1310 = vsel %vm1159, %v1145, 0.0
      %1311 = vadd.xlane.f32.xlu0 %v1310
      %v1312 = vpop.xlane.xlu0 %1311
      %v1313 = vsel %vm1159, %v1146, 0.0
      %1314 = vadd.xlane.f32.xlu0 %v1313
      %v1315 = vpop.xlane.xlu0 %1314
      %v1316 = vsel %vm1159, %v1147, 0.0
      %1317 = vadd.xlane.f32.xlu0 %v1316
      %v1318 = vpop.xlane.xlu0 %1317
      %v1319 = vsel %vm1159, %v1148, 0.0
      %1320 = vadd.xlane.f32.xlu0 %v1319
      %v1321 = vpop.xlane.xlu0 %1320
      %v1322 = vsel %vm1159, %v1149, 0.0
      %1323 = vadd.xlane.f32.xlu0 %v1322
      %v1324 = vpop.xlane.xlu0 %1323
      %v1325 = vsel %vm1159, %v1150, 0.0
      %1326 = vadd.xlane.f32.xlu0 %v1325
      %v1327 = vpop.xlane.xlu0 %1326
      %v1328 = vsel %vm1159, %v1151, 0.0
      %1329 = vadd.xlane.f32.xlu0 %v1328
      %v1330 = vpop.xlane.xlu0 %1329
      %v1331 = vsel %vm1159, %v1152, 0.0
      %1332 = vadd.xlane.f32.xlu0 %v1331
      %v1333 = vpop.xlane.xlu0 %1332
      %v1334 = vsel %vm1159, %v1153, 0.0
      %1335 = vadd.xlane.f32.xlu0 %v1334
      %v1336 = vpop.xlane.xlu0 %1335
      %v1337 = vsel %vm1159, %v1154, 0.0
      %1338 = vadd.xlane.f32.xlu0 %v1337
      %v1339 = vpop.xlane.xlu0 %1338
      %v1340 = vsel %vm1159, %v1155, 0.0
      %1341 = vadd.xlane.f32.xlu0 %v1340
      %v1342 = vpop.xlane.xlu0 %1341
      %v1343 = vsel %vm1159, %v1156, 0.0
      %1344 = vadd.xlane.f32.xlu0 %v1343
      %v1345 = vpop.xlane.xlu0 %1344
      %v1346 = vsel %vm1159, %v1157, 0.0
      %1347 = vadd.xlane.f32.xlu0 %v1346
      %v1348 = vpop.xlane.xlu0 %1347
      %v1349 = vsel %vm1159, %v1158, 0.0
      %1350 = vadd.xlane.f32.xlu0 %v1349
      %v1351 = vpop.xlane.xlu0 %1350
      %s1352 = sld [smem:[#allocation2]]
      %v1353 = vstv %s1352
      %v1354 = vadd.f32 %v1162, %v1353
      %v1355 = vadd.f32 %v1165, %v1353
      %v1356 = vadd.f32 %v1168, %v1353
      %v1357 = vadd.f32 %v1171, %v1353
      %v1358 = vadd.f32 %v1174, %v1353
      %v1359 = vadd.f32 %v1177, %v1353
      %v1360 = vadd.f32 %v1180, %v1353
      %v1361 = vadd.f32 %v1183, %v1353
      %v1362 = vadd.f32 %v1186, %v1353
      %v1363 = vadd.f32 %v1189, %v1353
      %v1364 = vadd.f32 %v1192, %v1353
      %v1365 = vadd.f32 %v1195, %v1353
      %v1366 = vadd.f32 %v1198, %v1353
      %v1367 = vadd.f32 %v1201, %v1353
      %v1368 = vadd.f32 %v1204, %v1353
      %v1369 = vadd.f32 %v1207, %v1353
      %v1370 = vadd.f32 %v1210, %v1353
      %v1371 = vadd.f32 %v1213, %v1353
      %v1372 = vadd.f32 %v1216, %v1353
      %v1373 = vadd.f32 %v1219, %v1353
      %v1374 = vadd.f32 %v1222, %v1353
      %v1375 = vadd.f32 %v1225, %v1353
      %v1376 = vadd.f32 %v1228, %v1353
      %v1377 = vadd.f32 %v1231, %v1353
      %v1378 = vadd.f32 %v1234, %v1353
      %v1379 = vadd.f32 %v1237, %v1353
      %v1380 = vadd.f32 %v1240, %v1353
      %v1381 = vadd.f32 %v1243, %v1353
      %v1382 = vadd.f32 %v1246, %v1353
      %v1383 = vadd.f32 %v1249, %v1353
      %v1384 = vadd.f32 %v1252, %v1353
      %v1385 = vadd.f32 %v1255, %v1353
      %v1386 = vadd.f32 %v1258, %v1353
      %v1387 = vadd.f32 %v1261, %v1353
      %v1388 = vadd.f32 %v1264, %v1353
      %v1389 = vadd.f32 %v1267, %v1353
      %v1390 = vadd.f32 %v1270, %v1353
      %v1391 = vadd.f32 %v1273, %v1353
      %v1392 = vadd.f32 %v1276, %v1353
      %v1393 = vadd.f32 %v1279, %v1353
      %v1394 = vadd.f32 %v1282, %v1353
      %v1395 = vadd.f32 %v1285, %v1353
      %v1396 = vadd.f32 %v1288, %v1353
      %v1397 = vadd.f32 %v1291, %v1353
      %v1398 = vadd.f32 %v1294, %v1353
      %v1399 = vadd.f32 %v1297, %v1353
      %v1400 = vadd.f32 %v1300, %v1353
      %v1401 = vadd.f32 %v1303, %v1353
      %v1402 = vadd.f32 %v1306, %v1353
      %v1403 = vadd.f32 %v1309, %v1353
      %v1404 = vadd.f32 %v1312, %v1353
      %v1405 = vadd.f32 %v1315, %v1353
      %v1406 = vadd.f32 %v1318, %v1353
      %v1407 = vadd.f32 %v1321, %v1353
      %v1408 = vadd.f32 %v1324, %v1353
      %v1409 = vadd.f32 %v1327, %v1353
      %v1410 = vadd.f32 %v1330, %v1353
      %v1411 = vadd.f32 %v1333, %v1353
      %v1412 = vadd.f32 %v1336, %v1353
      %v1413 = vadd.f32 %v1339, %v1353
      %v1414 = vadd.f32 %v1342, %v1353
      %v1415 = vadd.f32 %v1345, %v1353
      %v1416 = vadd.f32 %v1348, %v1353
      %v1417 = vadd.f32 %v1351, %v1353
      %vm1418 = vcmask 7168
      %1419 = vst.msk [vmem:[%s254] sm:$0xff] %vm1418, %v1354
      %1420 = vst.msk [vmem:[%s254 + $0x8] sm:$0xff] %vm1418, %v1355
      %1421 = vst.msk [vmem:[%s254 + $0x10] sm:$0xff] %vm1418, %v1356
      %1422 = vst.msk [vmem:[%s254 + $0x18] sm:$0xff] %vm1418, %v1357
      %1423 = vst.msk [vmem:[%s254 + $0x20] sm:$0xff] %vm1418, %v1358
      %1424 = vst.msk [vmem:[%s254 + $0x28] sm:$0xff] %vm1418, %v1359
      %1425 = vst.msk [vmem:[%s254 + $0x30] sm:$0xff] %vm1418, %v1360
      %1426 = vst.msk [vmem:[%s254 + $0x38] sm:$0xff] %vm1418, %v1361
      %1427 = vst.msk [vmem:[%s254 + $0x40] sm:$0xff] %vm1418, %v1362
      %1428 = vst.msk [vmem:[%s254 + $0x48] sm:$0xff] %vm1418, %v1363
      %1429 = vst.msk [vmem:[%s254 + $0x50] sm:$0xff] %vm1418, %v1364
      %1430 = vst.msk [vmem:[%s254 + $0x58] sm:$0xff] %vm1418, %v1365
      %1431 = vst.msk [vmem:[%s254 + $0x60] sm:$0xff] %vm1418, %v1366
      %1432 = vst.msk [vmem:[%s254 + $0x68] sm:$0xff] %vm1418, %v1367
      %1433 = vst.msk [vmem:[%s254 + $0x70] sm:$0xff] %vm1418, %v1368
      %1434 = vst.msk [vmem:[%s254 + $0x78] sm:$0xff] %vm1418, %v1369
      %1435 = vst.msk [vmem:[%s254 + $0x80] sm:$0xff] %vm1418, %v1370
      %1436 = vst.msk [vmem:[%s254 + $0x88] sm:$0xff] %vm1418, %v1371
      %1437 = vst.msk [vmem:[%s254 + $0x90] sm:$0xff] %vm1418, %v1372
      %1438 = vst.msk [vmem:[%s254 + $0x98] sm:$0xff] %vm1418, %v1373
      %1439 = vst.msk [vmem:[%s254 + $0xa0] sm:$0xff] %vm1418, %v1374
      %1440 = vst.msk [vmem:[%s254 + $0xa8] sm:$0xff] %vm1418, %v1375
      %1441 = vst.msk [vmem:[%s254 + $0xb0] sm:$0xff] %vm1418, %v1376
      %1442 = vst.msk [vmem:[%s254 + $0xb8] sm:$0xff] %vm1418, %v1377
      %1443 = vst.msk [vmem:[%s254 + $0xc0] sm:$0xff] %vm1418, %v1378
      %1444 = vst.msk [vmem:[%s254 + $0xc8] sm:$0xff] %vm1418, %v1379
      %1445 = vst.msk [vmem:[%s254 + $0xd0] sm:$0xff] %vm1418, %v1380
      %1446 = vst.msk [vmem:[%s254 + $0xd8] sm:$0xff] %vm1418, %v1381
      %1447 = vst.msk [vmem:[%s254 + $0xe0] sm:$0xff] %vm1418, %v1382
      %1448 = vst.msk [vmem:[%s254 + $0xe8] sm:$0xff] %vm1418, %v1383
      %1449 = vst.msk [vmem:[%s254 + $0xf0] sm:$0xff] %vm1418, %v1384
      %1450 = vst.msk [vmem:[%s254 + $0xf8] sm:$0xff] %vm1418, %v1385
      %1451 = vst.msk [vmem:[%s254 + $0x100] sm:$0xff] %vm1418, %v1386
      %1452 = vst.msk [vmem:[%s254 + $0x108] sm:$0xff] %vm1418, %v1387
      %1453 = vst.msk [vmem:[%s254 + $0x110] sm:$0xff] %vm1418, %v1388
      %1454 = vst.msk [vmem:[%s254 + $0x118] sm:$0xff] %vm1418, %v1389
      %1455 = vst.msk [vmem:[%s254 + $0x120] sm:$0xff] %vm1418, %v1390
      %1456 = vst.msk [vmem:[%s254 + $0x128] sm:$0xff] %vm1418, %v1391
      %1457 = vst.msk [vmem:[%s254 + $0x130] sm:$0xff] %vm1418, %v1392
      %1458 = vst.msk [vmem:[%s254 + $0x138] sm:$0xff] %vm1418, %v1393
      %1459 = vst.msk [vmem:[%s254 + $0x140] sm:$0xff] %vm1418, %v1394
      %1460 = vst.msk [vmem:[%s254 + $0x148] sm:$0xff] %vm1418, %v1395
      %1461 = vst.msk [vmem:[%s254 + $0x150] sm:$0xff] %vm1418, %v1396
      %1462 = vst.msk [vmem:[%s254 + $0x158] sm:$0xff] %vm1418, %v1397
      %1463 = vst.msk [vmem:[%s254 + $0x160] sm:$0xff] %vm1418, %v1398
      %1464 = vst.msk [vmem:[%s254 + $0x168] sm:$0xff] %vm1418, %v1399
      %1465 = vst.msk [vmem:[%s254 + $0x170] sm:$0xff] %vm1418, %v1400
      %1466 = vst.msk [vmem:[%s254 + $0x178] sm:$0xff] %vm1418, %v1401
      %1467 = vst.msk [vmem:[%s254 + $0x180] sm:$0xff] %vm1418, %v1402
      %1468 = vst.msk [vmem:[%s254 + $0x188] sm:$0xff] %vm1418, %v1403
      %1469 = vst.msk [vmem:[%s254 + $0x190] sm:$0xff] %vm1418, %v1404
      %1470 = vst.msk [vmem:[%s254 + $0x198] sm:$0xff] %vm1418, %v1405
      %1471 = vst.msk [vmem:[%s254 + $0x1a0] sm:$0xff] %vm1418, %v1406
      %1472 = vst.msk [vmem:[%s254 + $0x1a8] sm:$0xff] %vm1418, %v1407
      %1473 = vst.msk [vmem:[%s254 + $0x1b0] sm:$0xff] %vm1418, %v1408
      %1474 = vst.msk [vmem:[%s254 + $0x1b8] sm:$0xff] %vm1418, %v1409
      %1475 = vst.msk [vmem:[%s254 + $0x1c0] sm:$0xff] %vm1418, %v1410
      %1476 = vst.msk [vmem:[%s254 + $0x1c8] sm:$0xff] %vm1418, %v1411
      %1477 = vst.msk [vmem:[%s254 + $0x1d0] sm:$0xff] %vm1418, %v1412
      %1478 = vst.msk [vmem:[%s254 + $0x1d8] sm:$0xff] %vm1418, %v1413
      %1479 = vst.msk [vmem:[%s254 + $0x1e0] sm:$0xff] %vm1418, %v1414
      %1480 = vst.msk [vmem:[%s254 + $0x1e8] sm:$0xff] %vm1418, %v1415
      %1481 = vst.msk [vmem:[%s254 + $0x1f0] sm:$0xff] %vm1418, %v1416
      %1482 = vst.msk [vmem:[%s254 + $0x1f8] sm:$0xff] %vm1418, %v1417
      %s1483 = smul.u32 64, %s18
      %p1484 = scmp.lt.s32.totalorder %s1483, 127
      %s1485 = scalar_select %p1484, %s1483, 127
      %s1486 = smul.addr %s1485, 8
      %s1487 = scalar_lea.vmem %s6, %s1486
      // Predicated region
      $region45: #{critic_forward.1} parent=43 // pred_check
        %p1488 = pneg %p167
      $region46: #{critic_forward.1} parent=43 // pred_check_branch
        %1490 = sbr.rel (%p1488) target = $region48
      $region47: #{critic_forward.1} parent=43 // pred_region
        %s1491 = smul.u32 64, %s18
      $region48: #{critic_forward.1} parent=43 // pred_fallthru
        _
    $region44: #{critic_forward.1} parent=5 // pred_fallthru
      _
    %p1492 = scmp.le.s32.totalorder 2, %s13
    // Predicated region
    $region49: #{critic_forward.1} parent=5 // pred_check
      %p1493 = pneg %p1492
    $region50: #{critic_forward.1} parent=5 // pred_check_branch
      %1495 = sbr.rel (%p1493) target = $region52
    $region51: #{critic_forward.1} parent=5 // pred_region
      %s1496 = ssub.s32 %s13, 2
      // Predicated region
      $region53: #{critic_forward.1} parent=51 // pred_check
        %p1497 = pneg %p173
      $region54: #{critic_forward.1} parent=51 // pred_check_branch
        %1499 = sbr.rel (%p1497) target = $region56
      $region55: #{critic_forward.1} parent=51 // pred_region
        %s1500 = smul.u32 64, %s19
        %p1501 = scmp.lt.s32.totalorder %s1500, 127
        %s1502 = scalar_select %p1501, %s1500, 127
        %s1503 = smul.addr %s1502, 8
        %s1504 = scalar_lea.vmem %s6, %s1503
      $region56: #{critic_forward.1} parent=51 // pred_fallthru
        _
    $region52: #{critic_forward.1} parent=5 // pred_fallthru
      _
  $region6: #{critic_forward.1} parent=0 // loop_footer
    %s17 = sadd.s32 1, %s13
  $region7: #{critic_forward.1} parent=0 // loop_footer_branch
    %12 = sbr.rel target = $region3
  $region8: #{critic_forward.1} parent=0 // loop_exit
    _

</llo_original>
